<compile_context>
chip_gen: v7x
topology: tpu7x:2x2x1
jax: 0.10.0
libtpu: 0.0.40
codegen_flags: <defaults>
</compile_context>

<pallas_src>
import functools
from types import SimpleNamespace

import jax
import jax.numpy as jnp
from jax.experimental import pallas as pl
from jax.experimental.pallas import tpu as pltpu

N_MESH = 778
N_KPS = 21
N_CAM = 26
IMG_SIZE = 224.0


# --------------------------------------------------------------------------- #
# Pallas kernel: batched per-sample mask gather via MXU                        #
# --------------------------------------------------------------------------- #
def _mask_gather_kernel(h, w, b_tile, iota_ref, coords_ref, mask_ref, out_ref):
    """For each of the B_TILE samples in this block:
         gathered[b] = sum_v mask[b, round_clamp(y_v), round_clamp(x_v)]
       via a transpose-free MXU gather:
         S[r, v] = (mask_b @ onehot_x)[r, v] = mask_b[r, x_v]
         gathered[b] = sum( where(row_iota == y_v, S, 0) )
    """
    row_iota = iota_ref[0:h, :]          # (H, 778) f32, resident across grid steps
    col_iota = iota_ref[0:w, :]          # (W, 778) f32 (same resident buffer)

    lane = jax.lax.broadcasted_iota(jnp.int32, (1, 1, b_tile), 2)
    acc = jnp.zeros((1, 1, b_tile), jnp.float32)

    # Static unrolled loop over the samples in this block; the only value carried
    # between iterations is one f32 scalar per sample.
    for b in range(b_tile):
        coords = coords_ref[b]                                        # (2, 778) f32
        # torch.round and jnp.round are both half-to-even -> pixel parity holds.
        xi = jnp.clip(jnp.round(coords[0:1, :]), 0.0, float(w - 1))   # (1, 778)
        yi = jnp.clip(jnp.round(coords[1:2, :]), 0.0, float(h - 1))   # (1, 778)

        # Column one-hot: single bool->bf16 cast, exact 0/1 values.
        onehot_x = (col_iota == xi).astype(jnp.bfloat16)              # (W, 778)

        m = mask_ref[b]                                               # (H, W) bf16
        # Plain NN matmul on the MXU, f32 accumulation: S[r, v] = mask[r, x_v].
        s = jax.lax.dot_general(
            m, onehot_x,
            dimension_numbers=(((1,), (0,)), ((), ())),
            preferred_element_type=jnp.float32)                       # (H, 778)

        # Row one-hot as a predicate (no numeric one-hot materialised).
        gathered = jnp.sum(jnp.where(row_iota == yi, s, 0.0))         # scalar f32

        acc = acc + jnp.where(lane == b, gathered, 0.0)

    out_ref[...] = acc                                                # one lane-dense store


def _choose_b_tile(bs, h, w):
    """Samples per grid step.  Cap so double-buffered bf16 mask tiles stay
    ~<= 4 MiB (well under the 16/32/32 MiB scoped-VMEM defaults of v5e/v6e/v7x,
    leaving room for the (H,778) intermediates), and keep the grid >= 2 steps
    when bs allows so both v7x TensorCores get work."""
    mask_bytes = 2  # bf16
    cap = max(1, (4 * 1024 * 1024) // (2 * h * w * mask_bytes))
    bt = max(1, min(8, cap, bs))
    while bt > 1 and -(-bs // bt) < 2:
        bt //= 2
    return bt


def _mask_gather(yhat_t, mask_hw, h, w):
    """yhat_t: (bs, 2, 778) f32 (row 0 = x, row 1 = y); mask_hw: (bs, h, w) bf16.
       Returns (bs,) f32: per-sample sums of mask values at rounded vertex pixels."""
    bs = yhat_t.shape[0]
    bt = _choose_b_tile(bs, h, w)
    steps = -(-bs // bt)
    bs_pad = steps * bt
    if bs_pad != bs:
        pad = bs_pad - bs
        yhat_t = jnp.pad(yhat_t, ((0, pad), (0, 0), (0, 0)))
        mask_hw = jnp.pad(mask_hw, ((0, pad), (0, 0), (0, 0)))

    hw_max = max(h, w)
    iota = jax.lax.broadcasted_iota(jnp.float32, (hw_max, N_MESH), 0)

    kernel = functools.partial(_mask_gather_kernel, h, w, bt)
    out = pl.pallas_call(
        kernel,
        grid=(steps,),
        in_specs=[
            pl.BlockSpec((hw_max, N_MESH), lambda i: (0, 0)),     # resident row/col iota
            pl.BlockSpec((bt, 2, N_MESH), lambda i: (i, 0, 0)),   # vertex coords (lane-dense)
            pl.BlockSpec((bt, h, w), lambda i: (i, 0, 0)),        # bf16 masks for this step
        ],
        out_specs=pl.BlockSpec((1, 1, bt), lambda i: (i, 0, 0)),
        out_shape=jax.ShapeDtypeStruct((steps, 1, bt), jnp.float32),
        # Per-step VMEM (224x224 masks, bt=8): ~1.6 MiB mask bufs + ~1.4 MiB resident
        # iota + a few MiB of (H,778) intermediates -> fits every generation's default.
        compiler_params=pltpu.CompilerParams(
            dimension_semantics=("parallel",)),                   # independent samples -> 2 TCs on v7x
    )(iota, yhat_t, mask_hw)
    return out.reshape(bs_pad)[:bs]


# --------------------------------------------------------------------------- #
# Jittable forward (elementwise terms in plain jnp, mask term via Pallas)      #
# --------------------------------------------------------------------------- #
@functools.partial(jax.jit, static_argnames=("alphas", "is_convlstm"))
def _hand3d_forward(mask, x2d_pred, x3d_pred, camera_param_pred, theta, beta,
                    joint_2d_target, joint_3d_target, camera_param_target,
                    dataset_type, *, alphas, is_convlstm):
    alpha_2d, alpha_3d, alpha_mask, alpha_reg, alpha_camera = alphas
    f32 = jnp.float32
    b, s, _ = x2d_pred.shape
    bs = b * s
    h, w = mask.shape[-2], mask.shape[-1]
    rampup_scale = jnp.ones((), f32)

    # ---- 2D joint L1 (image-size normalised) ----
    j2dp = x2d_pred[:, :, :42].reshape(bs, N_KPS, 2).astype(f32)
    j2dt = joint_2d_target.reshape(bs, N_KPS, 2).astype(f32)
    loss_2d = jnp.mean(jnp.sum(
        jnp.abs(j2dp.reshape(bs, -1) / IMG_SIZE - j2dt.reshape(bs, -1) / IMG_SIZE), axis=1))
    loss_2d = rampup_scale * alpha_2d * loss_2d

    # ---- 3D joint L2 ----
    j3dp = x3d_pred[:, :, :63].reshape(bs, N_KPS, 3).astype(f32)
    j3dt = joint_3d_target.reshape(bs, N_KPS, 3).astype(f32)
    diff_3d = j3dp - j3dt
    loss_3d = rampup_scale * alpha_3d * jnp.mean(jnp.sum(diff_3d.reshape(bs, -1) ** 2, axis=1))

    # ---- temporal loss: multiplied by literal 0.0 in the original PyTorch code;
    # 0.0*x is not DCE-able, so we skip the concatenates/reductions entirely ----
    del theta, beta
    loss_temp = jnp.zeros((), f32) if True else None  # same value for both branches
    _ = is_convlstm

    # ---- mask term (Pallas MXU gather kernel) ----
    yhat = x2d_pred[:, :, 42:].reshape(bs, N_MESH, 2).astype(f32)
    yhat_t = jnp.transpose(yhat, (0, 2, 1))                     # (bs, 2, 778) lane-dense
    # bf16 mask: halves HBM->VMEM bytes; exact for binary masks.
    mask_hw = mask.reshape(bs, h, w).astype(jnp.bfloat16)
    gathered = _mask_gather(yhat_t, mask_hw, h, w)              # (bs,)
    loss_mask = rampup_scale * alpha_mask * jnp.mean(1.0 - gathered / N_MESH)

    loss_reg = jnp.zeros((), f32)
    _ = alpha_reg

    # ---- camera term (jnp.where branches -> jittable, no host sync) ----
    camp = camera_param_pred[:, :, :N_CAM].reshape(bs, N_CAM).astype(f32)
    camt = camera_param_target[:, :, :N_CAM].reshape(bs, N_CAM).astype(f32)
    cs = (camp - camt) ** 2
    loss_cam_d7 = jnp.mean(cs[:, 16:26])
    loss_cam_full = (jnp.mean(cs[:, 0:1]) + jnp.mean(cs[:, 1:3]) + jnp.mean(cs[:, 3:6]) +
                     jnp.mean(cs[:, 6:16]) + jnp.mean(cs[:, 16:26]))
    loss_cam_sel = jnp.where(dataset_type[0] == 7, loss_cam_d7, loss_cam_full)
    has_cam = jnp.abs(jnp.sum(camera_param_target.astype(f32))) > 0
    loss_camera = jnp.where(has_cam, alpha_camera * loss_cam_sel, jnp.zeros((), f32))
    # TODO(synk): original prints host-side numpy theta/beta camera-diff diagnostics
    # here; omitted to keep the forward jittable and stdout clean.

    loss = loss_2d + loss_3d + loss_mask + loss_reg + loss_camera + loss_temp

    # ---- per-keypoint euclidean distances (returned as device arrays) ----
    diff_2d = j2dp - j2dt
    euclid_2d = jnp.sqrt(jnp.sum(diff_2d ** 2, axis=2))         # (bs, 21)
    euclid_3d = jnp.sqrt(jnp.sum(diff_3d ** 2, axis=2))         # (bs, 21)

    return loss, loss_2d, loss_3d, loss_mask, loss_reg, loss_camera, euclid_2d, euclid_3d


class Hand3DLossPallas:
    """JAX/Pallas port of the PyTorch Hand3DLoss module (forward only)."""

    def __init__(self, args, pretrain=False):
        self.args = args
        self.pretrain = pretrain
        if self.pretrain:
            # (alpha_2d, alpha_3d, alpha_mask, alpha_reg, alpha_camera)
            self.alphas = (0, 0, 0, 0, 1)
        else:
            self.alphas = (5, 100, 10, 0, 1)
        self.n_meshes = N_MESH
        self.img_size = 224

    def get_rampup_scale(self, epoch):
        return 1.0

    def __call__(self, epoch, mask, predictions, targets):
        x2d_pred, x3d_pred, camera_param_pred, theta, beta = predictions
        (joint_2d_target, joint_3d_target, _verts_3d_target,
         camera_param_target, dataset_type) = targets

        (loss, loss_2d, loss_3d, loss_mask, loss_reg, loss_camera,
         euclid_2d, euclid_3d) = _hand3d_forward(
            mask, x2d_pred, x3d_pred, camera_param_pred, theta, beta,
            joint_2d_target, joint_3d_target, camera_param_target,
            jnp.asarray(dataset_type),
            alphas=self.alphas,
            is_convlstm=('ConvLSTM' in self.args.model_name))

        avg_distance_2d = [euclid_2d[:, i] for i in range(self.args.n_kps)]
        avg_distance_3d = [euclid_3d[:, i] for i in range(self.args.n_kps)]
        # Scalar parts are device arrays (original returned .item(); avoiding the
        # host sync lets XLA overlap the loss with surrounding work).
        return (loss, [loss_2d, loss_3d, loss_mask, loss_reg, loss_camera,
                       avg_distance_2d, avg_distance_3d])


# --------------------------------------------------------------------------- #
# Pure-jnp reference (mirrors the PyTorch forward) for validation              #
# --------------------------------------------------------------------------- #
def _reference_total_loss(mask, predictions, targets):
    x2d, x3d, camp, _theta, _beta = predictions
    j2dt, j3dt, _verts, camt, dtype_arr = targets
    b, s, _ = x2d.shape
    bs = b * s
    h, w = mask.shape[-2], mask.shape[-1]

    j2dp = x2d[:, :, :42].reshape(bs, 42)
    l2d = 5.0 * jnp.mean(jnp.sum(jnp.abs(j2dp / 224.0 - j2dt.reshape(bs, 42) / 224.0), axis=1))
    d3 = x3d[:, :, :63].reshape(bs, 63) - j3dt.reshape(bs, 63)
    l3d = 100.0 * jnp.mean(jnp.sum(d3 ** 2, axis=1))

    yh = x2d[:, :, 42:].reshape(bs, N_MESH, 2)
    xi = jnp.clip(jnp.round(yh[..., 0]), 0, w - 1).astype(jnp.int32)
    yi = jnp.clip(jnp.round(yh[..., 1]), 0, h - 1).astype(jnp.int32)
    mf = mask.reshape(bs, h * w)
    gathered = jnp.take_along_axis(mf, yi * w + xi, axis=1)
    lmask = 10.0 * jnp.mean(1.0 - jnp.sum(gathered, axis=1) / N_MESH)

    cs = (camp[:, :, :N_CAM].reshape(bs, N_CAM) - camt[:, :, :N_CAM].reshape(bs, N_CAM)) ** 2
    if abs(float(jnp.sum(camt))) > 0:
        if int(dtype_arr[0]) == 7:
            lcam = jnp.mean(cs[:, 16:26])
        else:
            lcam = (jnp.mean(cs[:, 0:1]) + jnp.mean(cs[:, 1:3]) + jnp.mean(cs[:, 3:6]) +
                    jnp.mean(cs[:, 6:16]) + jnp.mean(cs[:, 16:26]))
    else:
        lcam = jnp.zeros(())
    return l2d + l3d + lmask + lcam


if __name__ == "__main__":
    key = jax.random.PRNGKey(0)
    B, S, H, W = 2, 4, 16, 16
    ks = jax.random.split(key, 10)

    x2d_pred = jax.random.uniform(ks[0], (B, S, 42 + N_MESH * 2), jnp.float32, -2.0, W + 2.0)
    x3d_pred = jax.random.normal(ks[1], (B, S, 63), jnp.float32)
    camera_param_pred = jax.random.normal(ks[2], (B, S, N_CAM), jnp.float32)
    theta = jax.random.normal(ks[3], (B, S, 10), jnp.float32)
    beta = jax.random.normal(ks[4], (B, S, 10), jnp.float32)
    joint_2d_target = jax.random.uniform(ks[5], (B, S, N_KPS, 2), jnp.float32, 0.0, 224.0)
    joint_3d_target = jax.random.normal(ks[6], (B, S, N_KPS, 3), jnp.float32)
    verts_3d_target = jax.random.normal(ks[7], (B, S, N_MESH, 3), jnp.float32)
    camera_param_target = jax.random.normal(ks[8], (B, S, N_CAM), jnp.float32)
    dataset_type = jnp.zeros((B,), jnp.int32)
    mask = (jax.random.uniform(ks[9], (B, S, 1, H, W)) > 0.5).astype(jnp.float32)

    args = SimpleNamespace(model_name="ConvLSTM_hand3d", n_kps=N_KPS)
    loss_fn = Hand3DLossPallas(args, pretrain=False)

    predictions = (x2d_pred, x3d_pred, camera_param_pred, theta, beta)
    targets = (joint_2d_target, joint_3d_target, verts_3d_target,
               camera_param_target, dataset_type)

    loss, parts = loss_fn(0, mask, predictions, targets)
    loss = jax.block_until_ready(loss)

    ref = jax.block_until_ready(_reference_total_loss(mask, predictions, targets))
    assert jnp.allclose(loss, ref, rtol=2e-3, atol=1e-3), (float(loss), float(ref))

    print("KERNEL_OK")
</pallas_src>

<mosaic_0001>
module attributes {stable_mosaic.version = 11 : i64} {
  func.func @_mask_gather_kernel(%arg0: i32, %arg1: memref<16x778xf32, #tpu.memory_space<vmem>>, %arg2: memref<4x2x778xf32, #tpu.memory_space<vmem>>, %arg3: memref<4x16x16xbf16, #tpu.memory_space<vmem>>, %arg4: memref<1x1x4xf32, #tpu.memory_space<vmem>>) attributes {dimension_semantics = [#tpu.dimension_semantics<parallel>], iteration_bounds = array<i64: 2>, scalar_prefetch = 0 : i64, scratch_operands = 0 : i64, tpu.core_type = #tpu.core_type<tc>, window_params = [{pipeline_mode = #tpu.pipeline_mode<synchronous>, transform_indices = @transform_0, window_bounds = array<i64: 16, 778>}, {transform_indices = @transform_1, window_bounds = array<i64: 4, 2, 778>}, {transform_indices = @transform_2, window_bounds = array<i64: 4, 16, 16>}, {transform_indices = @transform_3, window_bounds = array<i64: 1, 1, 4>}]} {
    %c0 = arith.constant 0 : index
    %c0_0 = arith.constant 0 : index
    %0 = vector.load %arg1[%c0, %c0_0] : memref<16x778xf32, #tpu.memory_space<vmem>>, vector<16x778xf32>
    %c0_1 = arith.constant 0 : index
    %c0_2 = arith.constant 0 : index
    %1 = vector.load %arg1[%c0_1, %c0_2] : memref<16x778xf32, #tpu.memory_space<vmem>>, vector<16x778xf32>
    %2 = tpu.iota {dimensions = array<i32: 2>} : vector<1x1x4xi32>
    %cst = arith.constant 0.000000e+00 : f32
    %3 = vector.broadcast %cst : f32 to vector<1x1x4xf32>
    %c0_3 = arith.constant 0 : index
    %c0_4 = arith.constant 0 : index
    %c0_5 = arith.constant 0 : index
    %4 = vector.load %arg2[%c0_3, %c0_4, %c0_5] : memref<4x2x778xf32, #tpu.memory_space<vmem>>, vector<1x2x778xf32>
    %5 = vector.shape_cast %4 : vector<1x2x778xf32> to vector<2x778xf32>
    %6 = vector.extract_strided_slice %5 {offsets = [0, 0], sizes = [1, 778], strides = [1, 1]} : vector<2x778xf32> to vector<1x778xf32>
    %7 = math.roundeven %6 : vector<1x778xf32>
    %cst_6 = arith.constant 0.000000e+00 : f32
    %cst_7 = arith.constant 1.500000e+01 : f32
    %8 = vector.broadcast %cst_6 : f32 to vector<1x778xf32>
    %9 = arith.maximumf %8, %7 : vector<1x778xf32>
    %10 = vector.broadcast %cst_7 : f32 to vector<1x778xf32>
    %11 = arith.minimumf %10, %9 : vector<1x778xf32>
    %12 = vector.extract_strided_slice %5 {offsets = [1, 0], sizes = [1, 778], strides = [1, 1]} : vector<2x778xf32> to vector<1x778xf32>
    %13 = math.roundeven %12 : vector<1x778xf32>
    %cst_8 = arith.constant 0.000000e+00 : f32
    %cst_9 = arith.constant 1.500000e+01 : f32
    %14 = vector.broadcast %cst_8 : f32 to vector<1x778xf32>
    %15 = arith.maximumf %14, %13 : vector<1x778xf32>
    %16 = vector.broadcast %cst_9 : f32 to vector<1x778xf32>
    %17 = arith.minimumf %16, %15 : vector<1x778xf32>
    %18 = vector.broadcast %11 : vector<1x778xf32> to vector<16x778xf32>
    %19 = arith.cmpf oeq, %1, %18 : vector<16x778xf32>
    %20 = arith.extui %19 : vector<16x778xi1> to vector<16x778xi32>
    %21 = arith.sitofp %20 : vector<16x778xi32> to vector<16x778xf32>
    %22 = arith.truncf %21 : vector<16x778xf32> to vector<16x778xbf16>
    %c0_10 = arith.constant 0 : index
    %c0_11 = arith.constant 0 : index
    %c0_12 = arith.constant 0 : index
    %23 = vector.load %arg3[%c0_10, %c0_11, %c0_12] : memref<4x16x16xbf16, #tpu.memory_space<vmem>>, vector<1x16x16xbf16>
    %24 = vector.shape_cast %23 : vector<1x16x16xbf16> to vector<16x16xbf16>
    %cst_13 = arith.constant dense<0.000000e+00> : vector<16x778xf32>
    %25 = tpu.matmul %24, %22, %cst_13 {dimension_numbers = #tpu.dot_dimension_numbers<[1], [0], [0], [1], [0, 0, 1, 1], [], []>} : vector<16x16xbf16>, vector<16x778xbf16>, vector<16x778xf32> -> vector<16x778xf32>
    %26 = vector.broadcast %17 : vector<1x778xf32> to vector<16x778xf32>
    %27 = arith.cmpf oeq, %0, %26 : vector<16x778xf32>
    %cst_14 = arith.constant 0.000000e+00 : f32
    %28 = vector.broadcast %cst_14 : f32 to vector<16x778xf32>
    %29 = arith.select %27, %25, %28 : vector<16x778xi1>, vector<16x778xf32>
    %30 = vector.shape_cast %29 : vector<16x778xf32> to vector<1x16x778xf32>
    %cst_15 = arith.constant dense<0.000000e+00> : vector<1xf32>
    %31 = vector.multi_reduction <add>, %30, %cst_15 [1, 2] : vector<1x16x778xf32> to vector<1xf32>
    %32 = vector.shape_cast %31 : vector<1xf32> to vector<1x1x1xf32>
    %33 = vector.extract %32[0, 0, 0] : f32 from vector<1x1x1xf32>
    %c0_i32 = arith.constant 0 : i32
    %34 = vector.broadcast %c0_i32 : i32 to vector<1x1x4xi32>
    %35 = arith.cmpi eq, %2, %34 : vector<1x1x4xi32>
    %cst_16 = arith.constant 0.000000e+00 : f32
    %36 = vector.broadcast %33 : f32 to vector<1x1x4xf32>
    %37 = vector.broadcast %cst_16 : f32 to vector<1x1x4xf32>
    %38 = arith.select %35, %36, %37 : vector<1x1x4xi1>, vector<1x1x4xf32>
    %39 = arith.addf %3, %38 : vector<1x1x4xf32>
    %c1 = arith.constant 1 : index
    %c0_17 = arith.constant 0 : index
    %c0_18 = arith.constant 0 : index
    %40 = vector.load %arg2[%c1, %c0_17, %c0_18] : memref<4x2x778xf32, #tpu.memory_space<vmem>>, vector<1x2x778xf32>
    %41 = vector.shape_cast %40 : vector<1x2x778xf32> to vector<2x778xf32>
    %42 = vector.extract_strided_slice %41 {offsets = [0, 0], sizes = [1, 778], strides = [1, 1]} : vector<2x778xf32> to vector<1x778xf32>
    %43 = math.roundeven %42 : vector<1x778xf32>
    %cst_19 = arith.constant 0.000000e+00 : f32
    %cst_20 = arith.constant 1.500000e+01 : f32
    %44 = vector.broadcast %cst_19 : f32 to vector<1x778xf32>
    %45 = arith.maximumf %44, %43 : vector<1x778xf32>
    %46 = vector.broadcast %cst_20 : f32 to vector<1x778xf32>
    %47 = arith.minimumf %46, %45 : vector<1x778xf32>
    %48 = vector.extract_strided_slice %41 {offsets = [1, 0], sizes = [1, 778], strides = [1, 1]} : vector<2x778xf32> to vector<1x778xf32>
    %49 = math.roundeven %48 : vector<1x778xf32>
    %cst_21 = arith.constant 0.000000e+00 : f32
    %cst_22 = arith.constant 1.500000e+01 : f32
    %50 = vector.broadcast %cst_21 : f32 to vector<1x778xf32>
    %51 = arith.maximumf %50, %49 : vector<1x778xf32>
    %52 = vector.broadcast %cst_22 : f32 to vector<1x778xf32>
    %53 = arith.minimumf %52, %51 : vector<1x778xf32>
    %54 = vector.broadcast %47 : vector<1x778xf32> to vector<16x778xf32>
    %55 = arith.cmpf oeq, %1, %54 : vector<16x778xf32>
    %56 = arith.extui %55 : vector<16x778xi1> to vector<16x778xi32>
    %57 = arith.sitofp %56 : vector<16x778xi32> to vector<16x778xf32>
    %58 = arith.truncf %57 : vector<16x778xf32> to vector<16x778xbf16>
    %c1_23 = arith.constant 1 : index
    %c0_24 = arith.constant 0 : index
    %c0_25 = arith.constant 0 : index
    %59 = vector.load %arg3[%c1_23, %c0_24, %c0_25] : memref<4x16x16xbf16, #tpu.memory_space<vmem>>, vector<1x16x16xbf16>
    %60 = vector.shape_cast %59 : vector<1x16x16xbf16> to vector<16x16xbf16>
    %cst_26 = arith.constant dense<0.000000e+00> : vector<16x778xf32>
    %61 = tpu.matmul %60, %58, %cst_26 {dimension_numbers = #tpu.dot_dimension_numbers<[1], [0], [0], [1], [0, 0, 1, 1], [], []>} : vector<16x16xbf16>, vector<16x778xbf16>, vector<16x778xf32> -> vector<16x778xf32>
    %62 = vector.broadcast %53 : vector<1x778xf32> to vector<16x778xf32>
    %63 = arith.cmpf oeq, %0, %62 : vector<16x778xf32>
    %cst_27 = arith.constant 0.000000e+00 : f32
    %64 = vector.broadcast %cst_27 : f32 to vector<16x778xf32>
    %65 = arith.select %63, %61, %64 : vector<16x778xi1>, vector<16x778xf32>
    %66 = vector.shape_cast %65 : vector<16x778xf32> to vector<1x16x778xf32>
    %cst_28 = arith.constant dense<0.000000e+00> : vector<1xf32>
    %67 = vector.multi_reduction <add>, %66, %cst_28 [1, 2] : vector<1x16x778xf32> to vector<1xf32>
    %68 = vector.shape_cast %67 : vector<1xf32> to vector<1x1x1xf32>
    %69 = vector.extract %68[0, 0, 0] : f32 from vector<1x1x1xf32>
    %c1_i32 = arith.constant 1 : i32
    %70 = vector.broadcast %c1_i32 : i32 to vector<1x1x4xi32>
    %71 = arith.cmpi eq, %2, %70 : vector<1x1x4xi32>
    %cst_29 = arith.constant 0.000000e+00 : f32
    %72 = vector.broadcast %69 : f32 to vector<1x1x4xf32>
    %73 = vector.broadcast %cst_29 : f32 to vector<1x1x4xf32>
    %74 = arith.select %71, %72, %73 : vector<1x1x4xi1>, vector<1x1x4xf32>
    %75 = arith.addf %39, %74 : vector<1x1x4xf32>
    %c2 = arith.constant 2 : index
    %c0_30 = arith.constant 0 : index
    %c0_31 = arith.constant 0 : index
    %76 = vector.load %arg2[%c2, %c0_30, %c0_31] : memref<4x2x778xf32, #tpu.memory_space<vmem>>, vector<1x2x778xf32>
    %77 = vector.shape_cast %76 : vector<1x2x778xf32> to vector<2x778xf32>
    %78 = vector.extract_strided_slice %77 {offsets = [0, 0], sizes = [1, 778], strides = [1, 1]} : vector<2x778xf32> to vector<1x778xf32>
    %79 = math.roundeven %78 : vector<1x778xf32>
    %cst_32 = arith.constant 0.000000e+00 : f32
    %cst_33 = arith.constant 1.500000e+01 : f32
    %80 = vector.broadcast %cst_32 : f32 to vector<1x778xf32>
    %81 = arith.maximumf %80, %79 : vector<1x778xf32>
    %82 = vector.broadcast %cst_33 : f32 to vector<1x778xf32>
    %83 = arith.minimumf %82, %81 : vector<1x778xf32>
    %84 = vector.extract_strided_slice %77 {offsets = [1, 0], sizes = [1, 778], strides = [1, 1]} : vector<2x778xf32> to vector<1x778xf32>
    %85 = math.roundeven %84 : vector<1x778xf32>
    %cst_34 = arith.constant 0.000000e+00 : f32
    %cst_35 = arith.constant 1.500000e+01 : f32
    %86 = vector.broadcast %cst_34 : f32 to vector<1x778xf32>
    %87 = arith.maximumf %86, %85 : vector<1x778xf32>
    %88 = vector.broadcast %cst_35 : f32 to vector<1x778xf32>
    %89 = arith.minimumf %88, %87 : vector<1x778xf32>
    %90 = vector.broadcast %83 : vector<1x778xf32> to vector<16x778xf32>
    %91 = arith.cmpf oeq, %1, %90 : vector<16x778xf32>
    %92 = arith.extui %91 : vector<16x778xi1> to vector<16x778xi32>
    %93 = arith.sitofp %92 : vector<16x778xi32> to vector<16x778xf32>
    %94 = arith.truncf %93 : vector<16x778xf32> to vector<16x778xbf16>
    %c2_36 = arith.constant 2 : index
    %c0_37 = arith.constant 0 : index
    %c0_38 = arith.constant 0 : index
    %95 = vector.load %arg3[%c2_36, %c0_37, %c0_38] : memref<4x16x16xbf16, #tpu.memory_space<vmem>>, vector<1x16x16xbf16>
    %96 = vector.shape_cast %95 : vector<1x16x16xbf16> to vector<16x16xbf16>
    %cst_39 = arith.constant dense<0.000000e+00> : vector<16x778xf32>
    %97 = tpu.matmul %96, %94, %cst_39 {dimension_numbers = #tpu.dot_dimension_numbers<[1], [0], [0], [1], [0, 0, 1, 1], [], []>} : vector<16x16xbf16>, vector<16x778xbf16>, vector<16x778xf32> -> vector<16x778xf32>
    %98 = vector.broadcast %89 : vector<1x778xf32> to vector<16x778xf32>
    %99 = arith.cmpf oeq, %0, %98 : vector<16x778xf32>
    %cst_40 = arith.constant 0.000000e+00 : f32
    %100 = vector.broadcast %cst_40 : f32 to vector<16x778xf32>
    %101 = arith.select %99, %97, %100 : vector<16x778xi1>, vector<16x778xf32>
    %102 = vector.shape_cast %101 : vector<16x778xf32> to vector<1x16x778xf32>
    %cst_41 = arith.constant dense<0.000000e+00> : vector<1xf32>
    %103 = vector.multi_reduction <add>, %102, %cst_41 [1, 2] : vector<1x16x778xf32> to vector<1xf32>
    %104 = vector.shape_cast %103 : vector<1xf32> to vector<1x1x1xf32>
    %105 = vector.extract %104[0, 0, 0] : f32 from vector<1x1x1xf32>
    %c2_i32 = arith.constant 2 : i32
    %106 = vector.broadcast %c2_i32 : i32 to vector<1x1x4xi32>
    %107 = arith.cmpi eq, %2, %106 : vector<1x1x4xi32>
    %cst_42 = arith.constant 0.000000e+00 : f32
    %108 = vector.broadcast %105 : f32 to vector<1x1x4xf32>
    %109 = vector.broadcast %cst_42 : f32 to vector<1x1x4xf32>
    %110 = arith.select %107, %108, %109 : vector<1x1x4xi1>, vector<1x1x4xf32>
    %111 = arith.addf %75, %110 : vector<1x1x4xf32>
    %c3 = arith.constant 3 : index
    %c0_43 = arith.constant 0 : index
    %c0_44 = arith.constant 0 : index
    %112 = vector.load %arg2[%c3, %c0_43, %c0_44] : memref<4x2x778xf32, #tpu.memory_space<vmem>>, vector<1x2x778xf32>
    %113 = vector.shape_cast %112 : vector<1x2x778xf32> to vector<2x778xf32>
    %114 = vector.extract_strided_slice %113 {offsets = [0, 0], sizes = [1, 778], strides = [1, 1]} : vector<2x778xf32> to vector<1x778xf32>
    %115 = math.roundeven %114 : vector<1x778xf32>
    %cst_45 = arith.constant 0.000000e+00 : f32
    %cst_46 = arith.constant 1.500000e+01 : f32
    %116 = vector.broadcast %cst_45 : f32 to vector<1x778xf32>
    %117 = arith.maximumf %116, %115 : vector<1x778xf32>
    %118 = vector.broadcast %cst_46 : f32 to vector<1x778xf32>
    %119 = arith.minimumf %118, %117 : vector<1x778xf32>
    %120 = vector.extract_strided_slice %113 {offsets = [1, 0], sizes = [1, 778], strides = [1, 1]} : vector<2x778xf32> to vector<1x778xf32>
    %121 = math.roundeven %120 : vector<1x778xf32>
    %cst_47 = arith.constant 0.000000e+00 : f32
    %cst_48 = arith.constant 1.500000e+01 : f32
    %122 = vector.broadcast %cst_47 : f32 to vector<1x778xf32>
    %123 = arith.maximumf %122, %121 : vector<1x778xf32>
    %124 = vector.broadcast %cst_48 : f32 to vector<1x778xf32>
    %125 = arith.minimumf %124, %123 : vector<1x778xf32>
    %126 = vector.broadcast %119 : vector<1x778xf32> to vector<16x778xf32>
    %127 = arith.cmpf oeq, %1, %126 : vector<16x778xf32>
    %128 = arith.extui %127 : vector<16x778xi1> to vector<16x778xi32>
    %129 = arith.sitofp %128 : vector<16x778xi32> to vector<16x778xf32>
    %130 = arith.truncf %129 : vector<16x778xf32> to vector<16x778xbf16>
    %c3_49 = arith.constant 3 : index
    %c0_50 = arith.constant 0 : index
    %c0_51 = arith.constant 0 : index
    %131 = vector.load %arg3[%c3_49, %c0_50, %c0_51] : memref<4x16x16xbf16, #tpu.memory_space<vmem>>, vector<1x16x16xbf16>
    %132 = vector.shape_cast %131 : vector<1x16x16xbf16> to vector<16x16xbf16>
    %cst_52 = arith.constant dense<0.000000e+00> : vector<16x778xf32>
    %133 = tpu.matmul %132, %130, %cst_52 {dimension_numbers = #tpu.dot_dimension_numbers<[1], [0], [0], [1], [0, 0, 1, 1], [], []>} : vector<16x16xbf16>, vector<16x778xbf16>, vector<16x778xf32> -> vector<16x778xf32>
    %134 = vector.broadcast %125 : vector<1x778xf32> to vector<16x778xf32>
    %135 = arith.cmpf oeq, %0, %134 : vector<16x778xf32>
    %cst_53 = arith.constant 0.000000e+00 : f32
    %136 = vector.broadcast %cst_53 : f32 to vector<16x778xf32>
    %137 = arith.select %135, %133, %136 : vector<16x778xi1>, vector<16x778xf32>
    %138 = vector.shape_cast %137 : vector<16x778xf32> to vector<1x16x778xf32>
    %cst_54 = arith.constant dense<0.000000e+00> : vector<1xf32>
    %139 = vector.multi_reduction <add>, %138, %cst_54 [1, 2] : vector<1x16x778xf32> to vector<1xf32>
    %140 = vector.shape_cast %139 : vector<1xf32> to vector<1x1x1xf32>
    %141 = vector.extract %140[0, 0, 0] : f32 from vector<1x1x1xf32>
    %c3_i32 = arith.constant 3 : i32
    %142 = vector.broadcast %c3_i32 : i32 to vector<1x1x4xi32>
    %143 = arith.cmpi eq, %2, %142 : vector<1x1x4xi32>
    %cst_55 = arith.constant 0.000000e+00 : f32
    %144 = vector.broadcast %141 : f32 to vector<1x1x4xf32>
    %145 = vector.broadcast %cst_55 : f32 to vector<1x1x4xf32>
    %146 = arith.select %143, %144, %145 : vector<1x1x4xi1>, vector<1x1x4xf32>
    %147 = arith.addf %111, %146 : vector<1x1x4xf32>
    %c0_56 = arith.constant 0 : index
    %c0_57 = arith.constant 0 : index
    %c0_58 = arith.constant 0 : index
    %148 = vector.load %arg4[%c0_56, %c0_57, %c0_58] : memref<1x1x4xf32, #tpu.memory_space<vmem>>, vector<1x1x4xf32>
    tpu.vector_store %arg4[%c0_56, %c0_57, %c0_58], %147 {strides = array<i32>} : memref<1x1x4xf32, #tpu.memory_space<vmem>>, vector<1x1x4xf32>,
    return
  }
  func.func @transform_0(%arg0: i32) -> (i32, i32) {
    %c0_i32 = arith.constant 0 : i32
    %c0_i32_0 = arith.constant 0 : i32
    %c0_i32_1 = arith.constant 0 : i32
    return %c0_i32, %c0_i32_0 : i32, i32
  }
  func.func @transform_1(%arg0: i32) -> (i32, i32, i32) {
    %c0_i32 = arith.constant 0 : i32
    %c0_i32_0 = arith.constant 0 : i32
    %c0_i32_1 = arith.constant 0 : i32
    return %arg0, %c0_i32, %c0_i32_0 : i32, i32, i32
  }
  func.func @transform_2(%arg0: i32) -> (i32, i32, i32) {
    %c0_i32 = arith.constant 0 : i32
    %c0_i32_0 = arith.constant 0 : i32
    %c0_i32_1 = arith.constant 0 : i32
    return %arg0, %c0_i32, %c0_i32_0 : i32, i32, i32
  }
  func.func @transform_3(%arg0: i32) -> (i32, i32, i32) {
    %c0_i32 = arith.constant 0 : i32
    %c0_i32_0 = arith.constant 0 : i32
    %c0_i32_1 = arith.constant 0 : i32
    return %arg0, %c0_i32, %c0_i32_0 : i32, i32, i32
  }
}

</mosaic_0001>

<llo_original>
// kernel: _hand3d_forward.1
$region0: #{_hand3d_forward.1}
  #allocation0 [shape = 'u32[]', space=smem, size = 0x4, offset = 0x4, fixed_abs, tag = 'smem constant byte address 0x4 - core index']
  #allocation1 [shape = 'u32[144,128]{1,0:T(1,128)}', space=vmem, size = 0x12000, scoped, tag = 'internal scratch']
  %s0 = inlined_call_operand.vmem [shape: f32[16,778], index: 0, kind: input, shape index: {}]
  %s1 = inlined_call_operand.vmem [shape: f32[8,2,778], index: 1, kind: input, shape index: {}]
  %s2 = inlined_call_operand.vmem [shape: bf16[8,16,16], index: 2, kind: input, shape index: {}]
  %s3 = inlined_call_operand.vmem [shape: f32[2,1,4], index: 3, kind: output, shape index: {}]
  %s4 = sld [smem:[#allocation0]]
  $region45: #{_hand3d_forward.1} parent=0
    _
  %s6 = ssub.s32 1, %s4
  %s7 = scalar_select 0, %s6, %s4
  loop: start=0, step=1, limit=4
  $region2: #{_hand3d_forward.1} parent=0 // loop_pre_header
    _
  $region3: #{_hand3d_forward.1} parent=0 // loop_header
    %s9 = sphi 0, %s13
    %p10 = scmp.ge.s32.totalorder %s9, 4
    %s17 = sphi 0, %s17
    %s19 = sphi 0, %s17
    %s20 = sphi 0, %s19
    %s34 = sphi 0, %s20
    %s40 = sphi 0, %s42
    %s43 = sphi 0, %s40
    %s44 = sphi 0, %s43
    %s60 = sphi 0, %s44
    %s66 = sphi 0, %s68
    %s69 = sphi 0, %s66
    %s70 = sphi 0, %s69
    %s86 = sphi 0, %s70
    %s92 = sphi 0, %s94
    %s95 = sphi 0, %s92
    %s96 = sphi 0, %s95
    %s112 = sphi 0, %s96
  $region4: #{_hand3d_forward.1} parent=0 // loop_header_branch
    %12 = sbr.rel (%p10) target = $region8
  $region5: #{_hand3d_forward.1} parent=0 // loop_body
    %s14 = ssub.s32 %s9, 1
    %s15 = ssub.s32 %s9, 2
    %s16 = sadd.s32 %s9, 1
    %s18 = sadd.s32 %s17, 1
    %p21 = scmp.eq.s32.totalorder %s9, 1
    %p22 = scmp.ne.s32.totalorder %s17, %s19
    %p23 = scmp.eq.s32.totalorder %s9, 0
    %p24 = por %p22, %p23
    %p25 = scmp.ne.s32.totalorder %s17, %s19
    %p26 = scmp.eq.s32.totalorder %s14, 1
    %p27 = por %p25, %p26
    %p28 = scmp.ne.s32.totalorder %s19, %s20
    %p29 = scmp.eq.s32.totalorder %s14, 0
    %p30 = por %p28, %p29
    %p31 = scmp.ne.s32.totalorder %s19, %s20
    %p32 = scmp.eq.s32.totalorder %s15, 1
    %p33 = por %p31, %p32
    %p35 = scmp.ne.s32.totalorder %s20, %s34
    %p36 = scmp.eq.s32.totalorder %s15, 0
    %p37 = por %p35, %p36
    %s38 = ssub.s32 %s9, %s16
    %p39 = scmp.eq.s32.totalorder %s38, 0
    %s41 = sadd.s32 %s40, 1
    %s42 = scalar_select %p39, %s40, %s41
    %p45 = pneg %p39
    %p46 = scmp.eq.s32.totalorder %s9, 1
    %p47 = por %p45, %p46
    %p48 = scmp.ne.s32.totalorder %s40, %s43
    %p49 = scmp.eq.s32.totalorder %s9, 0
    %p50 = por %p48, %p49
    %p51 = scmp.ne.s32.totalorder %s40, %s43
    %p52 = scmp.eq.s32.totalorder %s14, 1
    %p53 = por %p51, %p52
    %p54 = scmp.ne.s32.totalorder %s43, %s44
    %p55 = scmp.eq.s32.totalorder %s14, 0
    %p56 = por %p54, %p55
    %p57 = scmp.ne.s32.totalorder %s43, %s44
    %p58 = scmp.eq.s32.totalorder %s15, 1
    %p59 = por %p57, %p58
    %p61 = scmp.ne.s32.totalorder %s44, %s60
    %p62 = scmp.eq.s32.totalorder %s15, 0
    %p63 = por %p61, %p62
    %s64 = ssub.s32 %s9, %s16
    %p65 = scmp.eq.s32.totalorder %s64, 0
    %s67 = sadd.s32 %s66, 1
    %s68 = scalar_select %p65, %s66, %s67
    %p71 = pneg %p65
    %p72 = scmp.eq.s32.totalorder %s9, 1
    %p73 = por %p71, %p72
    %p74 = scmp.ne.s32.totalorder %s66, %s69
    %p75 = scmp.eq.s32.totalorder %s9, 0
    %p76 = por %p74, %p75
    %p77 = scmp.ne.s32.totalorder %s66, %s69
    %p78 = scmp.eq.s32.totalorder %s14, 1
    %p79 = por %p77, %p78
    %p80 = scmp.ne.s32.totalorder %s69, %s70
    %p81 = scmp.eq.s32.totalorder %s14, 0
    %p82 = por %p80, %p81
    %p83 = scmp.ne.s32.totalorder %s69, %s70
    %p84 = scmp.eq.s32.totalorder %s15, 1
    %p85 = por %p83, %p84
    %p87 = scmp.ne.s32.totalorder %s70, %s86
    %p88 = scmp.eq.s32.totalorder %s15, 0
    %p89 = por %p87, %p88
    %s90 = ssub.s32 %s9, %s16
    %p91 = scmp.eq.s32.totalorder %s90, 0
    %s93 = sadd.s32 %s92, 1
    %s94 = scalar_select %p91, %s92, %s93
    %p97 = pneg %p91
    %p98 = scmp.eq.s32.totalorder %s9, 1
    %p99 = por %p97, %p98
    %p100 = scmp.ne.s32.totalorder %s92, %s95
    %p101 = scmp.eq.s32.totalorder %s9, 0
    %p102 = por %p100, %p101
    %p103 = scmp.ne.s32.totalorder %s92, %s95
    %p104 = scmp.eq.s32.totalorder %s14, 1
    %p105 = por %p103, %p104
    %p106 = scmp.ne.s32.totalorder %s95, %s96
    %p107 = scmp.eq.s32.totalorder %s14, 0
    %p108 = por %p106, %p107
    %p109 = scmp.ne.s32.totalorder %s95, %s96
    %p110 = scmp.eq.s32.totalorder %s15, 1
    %p111 = por %p109, %p110
    %p113 = scmp.ne.s32.totalorder %s96, %s112
    %p114 = scmp.eq.s32.totalorder %s15, 0
    %p115 = por %p113, %p114
    %p116 = scmp.le.s32.totalorder 1, %s9
    %p117 = scmp.lt.s32.totalorder %s9, 3
    %p118 = pnand %p116, %p117
    %p119 = pneg %p118
    // Predicated region
    $region9: #{_hand3d_forward.1} parent=5 // pred_check
      _
    $region10: #{_hand3d_forward.1} parent=5 // pred_check_branch
      %121 = sbr.rel (%p118) target = $region12
    $region11: #{_hand3d_forward.1} parent=5 // pred_region
      %s122 = ssub.s32 %s9, 1
      // Predicated region
      $region13: #{_hand3d_forward.1} parent=11 // pred_check
        %p123 = pneg %p30
      $region14: #{_hand3d_forward.1} parent=11 // pred_check_branch
        %125 = sbr.rel (%p123) target = $region16
      $region15: #{_hand3d_forward.1} parent=11 // pred_region
        _
      $region16: #{_hand3d_forward.1} parent=11 // pred_fallthru
        _
    $region12: #{_hand3d_forward.1} parent=5 // pred_fallthru
      _
    %p126 = scmp.lt.s32.totalorder %s9, 2
    // Predicated region
    $region17: #{_hand3d_forward.1} parent=5 // pred_check
      %p127 = pneg %p126
    $region18: #{_hand3d_forward.1} parent=5 // pred_check_branch
      %129 = sbr.rel (%p127) target = $region20
    $region19: #{_hand3d_forward.1} parent=5 // pred_region
      // Predicated region
      $region21: #{_hand3d_forward.1} parent=19 // pred_check
        %p130 = pneg %p50
      $region22: #{_hand3d_forward.1} parent=19 // pred_check_branch
        %132 = sbr.rel (%p130) target = $region24
      $region23: #{_hand3d_forward.1} parent=19 // pred_region
        %s133 = smul.u32 4, %s9
        %p134 = scmp.lt.s32.totalorder %s133, 7
        %s135 = scalar_select %p134, %s133, 7
        %s136 = smul.addr %s135, 7
        %s137 = smul.addr %s136, 2
        %s138 = scalar_lea.vmem %s1, %s137
        %s139 = smul.u32 4, %s9
      $region24: #{_hand3d_forward.1} parent=19 // pred_fallthru
        _
      // Predicated region
      $region25: #{_hand3d_forward.1} parent=19 // pred_check
        %p140 = pneg %p76
      $region26: #{_hand3d_forward.1} parent=19 // pred_check_branch
        %142 = sbr.rel (%p140) target = $region28
      $region27: #{_hand3d_forward.1} parent=19 // pred_region
        %s143 = smul.u32 4, %s9
        %p144 = scmp.lt.s32.totalorder %s143, 7
        %s145 = scalar_select %p144, %s143, 7
        %s146 = smul.addr %s145, 2
        %s147 = smul.addr %s146, 4
        %s148 = scalar_lea.vmem %s2, %s147
        %s149 = smul.u32 4, %s9
      $region28: #{_hand3d_forward.1} parent=19 // pred_fallthru
        _
    $region20: #{_hand3d_forward.1} parent=5 // pred_fallthru
      _
    %p150 = scmp.le.s32.totalorder 1, %s9
    %p151 = scmp.lt.s32.totalorder %s9, 3
    %p152 = pnand %p150, %p151
    %p153 = pneg %p152
    // Predicated region
    $region29: #{_hand3d_forward.1} parent=5 // pred_check
      _
    $region30: #{_hand3d_forward.1} parent=5 // pred_check_branch
      %155 = sbr.rel (%p152) target = $region32
    $region31: #{_hand3d_forward.1} parent=5 // pred_region
      %s156 = ssub.s32 %s9, 1
      %p157 = pneg %p30
      %p158 = pneg %p27
      %s159 = smul.u32 4, %s14
      %p160 = scmp.lt.s32.totalorder %s159, 7
      %s161 = scalar_select %p160, %s159, 7
      %s162 = smul.addr %s161, 7
      %s163 = smul.addr %s162, 2
      %s164 = scalar_lea.vmem %s1, %s163
      %p165 = pneg %p56
      %p166 = pneg %p53
      %s167 = smul.u32 4, %s14
      %p168 = scmp.lt.s32.totalorder %s167, 7
      %s169 = scalar_select %p168, %s167, 7
      %s170 = smul.addr %s169, 2
      %s171 = smul.addr %s170, 4
      %s172 = scalar_lea.vmem %s2, %s171
      %p173 = pneg %p82
      %p174 = pneg %p79
      %p175 = pneg %p108
      %p176 = pneg %p105
      %p177 = scmp.lt.s32.totalorder %s14, 1
      %s178 = scalar_select %p177, %s14, 1
      %s179 = scalar_lea.vmem %s3, %s178
      %s180 = smul.u32 4, %s14
      %p181 = scmp.lt.s32.totalorder %s180, 7
      %s182 = scalar_select %p181, %s180, 7
      %s183 = smul.addr %s182, 7
      %s184 = smul.addr %s183, 2
      %s185 = scalar_lea.vmem %s1, %s184
      %s186 = smul.u32 4, %s14
      %s187 = smul.u32 4, %s14
      %p188 = scmp.lt.s32.totalorder %s187, 7
      %s189 = scalar_select %p188, %s187, 7
      %s190 = smul.addr %s189, 2
      %s191 = smul.addr %s190, 4
      %s192 = scalar_lea.vmem %s2, %s191
      %s193 = smul.u32 4, %s14
      %p194 = scmp.lt.s32.totalorder %s14, 1
      %s195 = scalar_select %p194, %s14, 1
      %s196 = scalar_lea.vmem %s3, %s195
      %v198 = vld [vmem:[%s0] sm:$0xff]
      %v199 = vld [vmem:[%s0 + $0x8] sm:$0xff]
      %v200 = vld [vmem:[%s0 + $0x10] sm:$0xff]
      %v201 = vld [vmem:[%s0 + $0x18] sm:$0xff]
      %v202 = vld [vmem:[%s0 + $0x20] sm:$0xff]
      %v203 = vld [vmem:[%s0 + $0x28] sm:$0xff]
      %v204 = vld [vmem:[%s0 + $0x30] sm:$0xff]
      %v205 = vld [vmem:[%s0 + $0x38] sm:$0xff]
      %v206 = vld [vmem:[%s0 + $0x40] sm:$0xff]
      %v207 = vld [vmem:[%s0 + $0x48] sm:$0xff]
      %v208 = vld [vmem:[%s0 + $0x50] sm:$0xff]
      %v209 = vld [vmem:[%s0 + $0x58] sm:$0xff]
      %v210 = vld [vmem:[%s0 + $0x60] sm:$0xff]
      %v211 = vld [vmem:[%s0 + $0x68] sm:$0xff]
      %v212 = vlaneseq
      %v213 = vand.u32 %v212, 127
      %v214 = vld [vmem:[%s185] sm:$0xff]
      %v215 = vld [vmem:[%s185 + $0x8] sm:$0x3f]
      %v216 = vround.ne.pseudo %v214
      %v217 = vround.ne.pseudo %v215
      %v218 = vmax.f32 %v216, 0.0
      %v219 = vmax.f32 %v217, 0.0
      %v220 = vmin.f32 %v218, 15.0
      %v221 = vmin.f32 %v219, 15.0
      %v224 = vlaneseq
      %v225 = vshrl.u32 %v224, 7
      %v226 = vsub.s32 0, %v225
      %v227 = vrot.slane %v220, %v226
      %v228 = vlaneseq
      %v229 = vshrl.u32 %v228, 7
      %v230 = vsub.s32 2, %v229
      %v231 = vrot.slane %v220, %v230
      %v232 = vlaneseq
      %v233 = vshrl.u32 %v232, 7
      %v234 = vsub.s32 4, %v233
      %v235 = vrot.slane %v220, %v234
      %v236 = vlaneseq
      %v237 = vshrl.u32 %v236, 7
      %v238 = vsub.s32 6, %v237
      %v239 = vrot.slane %v220, %v238
      %v240 = vlaneseq
      %v241 = vshrl.u32 %v240, 7
      %v242 = vsub.s32 0, %v241
      %v243 = vrot.slane %v221, %v242
      %v244 = vlaneseq
      %v245 = vshrl.u32 %v244, 7
      %v246 = vsub.s32 2, %v245
      %v247 = vrot.slane %v221, %v246
      %v248 = vlaneseq
      %v249 = vshrl.u32 %v248, 7
      %v250 = vsub.s32 4, %v249
      %v251 = vrot.slane %v221, %v250
      %v259 = vlaneseq
      %v260 = vshrl.u32 %v259, 7
      %v261 = vsub.s32 0, %v260
      %v262 = vrot.slane %v227, %v261
      %v263 = vlaneseq
      %v264 = vshrl.u32 %v263, 7
      %v265 = vsub.s32 0, %v264
      %v266 = vrot.slane %v231, %v265
      %v267 = vlaneseq
      %v268 = vshrl.u32 %v267, 7
      %v269 = vsub.s32 0, %v268
      %v270 = vrot.slane %v235, %v269
      %v271 = vlaneseq
      %v272 = vshrl.u32 %v271, 7
      %v273 = vsub.s32 0, %v272
      %v274 = vrot.slane %v239, %v273
      %v275 = vlaneseq
      %v276 = vshrl.u32 %v275, 7
      %v277 = vsub.s32 0, %v276
      %v278 = vrot.slane %v243, %v277
      %v279 = vlaneseq
      %v280 = vshrl.u32 %v279, 7
      %v281 = vsub.s32 0, %v280
      %v282 = vrot.slane %v247, %v281
      %v283 = vlaneseq
      %v284 = vshrl.u32 %v283, 7
      %v285 = vsub.s32 0, %v284
      %v286 = vrot.slane %v251, %v285
      %vm287 = vcmp.eq.f32.partialorder %v198, %v262
      %vm288 = vcmp.eq.f32.partialorder %v199, %v266
      %vm289 = vcmp.eq.f32.partialorder %v200, %v270
      %vm290 = vcmp.eq.f32.partialorder %v201, %v274
      %vm291 = vcmp.eq.f32.partialorder %v202, %v278
      %vm292 = vcmp.eq.f32.partialorder %v203, %v282
      %vm293 = vcmp.eq.f32.partialorder %v204, %v286
      %vm294 = vcmp.eq.f32.partialorder %v205, %v262
      %vm295 = vcmp.eq.f32.partialorder %v206, %v266
      %vm296 = vcmp.eq.f32.partialorder %v207, %v270
      %vm297 = vcmp.eq.f32.partialorder %v208, %v274
      %vm298 = vcmp.eq.f32.partialorder %v209, %v278
      %vm299 = vcmp.eq.f32.partialorder %v210, %v282
      %vm300 = vcmp.eq.f32.partialorder %v211, %v286
      %v301 = vsel %vm287, 1, 0
      %v302 = vsel %vm288, 1, 0
      %v303 = vsel %vm289, 1, 0
      %v304 = vsel %vm290, 1, 0
      %v305 = vsel %vm291, 1, 0
      %v306 = vsel %vm292, 1, 0
      %v307 = vsel %vm293, 1, 0
      %v308 = vsel %vm294, 1, 0
      %v309 = vsel %vm295, 1, 0
      %v310 = vsel %vm296, 1, 0
      %v311 = vsel %vm297, 1, 0
      %v312 = vsel %vm298, 1, 0
      %v313 = vsel %vm299, 1, 0
      %v314 = vsel %vm300, 1, 0
      %v315 = vcvt.s32.f32 %v301
      %v316 = vcvt.s32.f32 %v302
      %v317 = vcvt.s32.f32 %v303
      %v318 = vcvt.s32.f32 %v304
      %v319 = vcvt.s32.f32 %v305
      %v320 = vcvt.s32.f32 %v306
      %v321 = vcvt.s32.f32 %v307
      %v322 = vcvt.s32.f32 %v308
      %v323 = vcvt.s32.f32 %v309
      %v324 = vcvt.s32.f32 %v310
      %v325 = vcvt.s32.f32 %v311
      %v326 = vcvt.s32.f32 %v312
      %v327 = vcvt.s32.f32 %v313
      %v328 = vcvt.s32.f32 %v314
      %v329 = vpack.c.bf16 %v322, %v315
      %v330 = vpack.c.bf16 %v323, %v316
      %v331 = vpack.c.bf16 %v324, %v317
      %v332 = vpack.c.bf16 %v325, %v318
      %v333 = vpack.c.bf16 %v326, %v319
      %v334 = vpack.c.bf16 %v327, %v320
      %v335 = vpack.c.bf16 %v328, %v321
      %v336 = vld [vmem:[%s192] sm:$0xf]
      %v337 = vld [vmem:[%s192 + $0x4] sm:$0xf]
      %v340 = vunpack.c.l.b16 %v336
      %v341 = vunpack.c.l.b16 %v337
      %v342 = vpack.c.b16 %v341, %v340
      %vm343 = vcmask 130048
      %v345 = vsel %vm343, %v342, 0
      %347 = vmatprep.subr.bf16.mxu0 %v330
      %348 = vmatpush1.bf16.msra.mxu0 %v329
      %349 = vmatprep.subr.bf16.mxu0 0
      %350 = vmatpush1.bf16.msra.mxu0 0
      %351 = vmatprep.subr.bf16.mxu0 0
      %352 = vmatpush1.bf16.msra.mxu0 0
      %353 = vmatprep.subr.bf16.mxu0 0
      %354 = vmatpush1.bf16.msra.mxu0 0
      %355 = vmatprep.subr.bf16.mxu0 0
      %356 = vmatpush1.bf16.msra.mxu0 0
      %357 = vmatprep.subr.bf16.mxu0 0
      %358 = vmatpush1.bf16.msra.mxu0 0
      %359 = vmatprep.subr.bf16.mxu0 0
      %360 = vmatpush1.bf16.msra.mxu0 0
      %361 = vmatprep.subr.bf16.mxu0 0
      %362 = vmatpush1.bf16.msra.mxu0 0
      %363 = vmatprep.subr.bf16.mxu0 0
      %364 = vmatpush1.bf16.msra.mxu0 0
      %365 = vmatprep.subr.bf16.mxu0 0
      %366 = vmatpush1.bf16.msra.mxu0 0
      %367 = vmatprep.subr.bf16.mxu0 0
      %368 = vmatpush1.bf16.msra.mxu0 0
      %369 = vmatprep.subr.bf16.mxu0 0
      %370 = vmatpush1.bf16.msra.mxu0 0
      %371 = vmatprep.subr.bf16.mxu0 0
      %372 = vmatpush1.bf16.msra.mxu0 0
      %373 = vmatprep.subr.bf16.mxu0 0
      %374 = vmatpush1.bf16.msra.mxu0 0
      %375 = vmatprep.subr.bf16.mxu0 0
      %376 = vmatpush1.bf16.msra.mxu0 0
      %377 = vmatprep.subr.bf16.mxu0 0
      %378 = vmatpush1.bf16.msra.mxu0 0
      %379 = vmatprep.mubr.bf16.mxu0 0
      %380 = vmatmul.mubr.bf16.gmra.mrb[0].mxu0 %v345
      %v381 = vpop.f32.mrb[0].mxu0
      %v382 = vadd.f32 0.0, %v381
      %v383 = vpop.f32.mrb[0].mxu0
      %v384 = vadd.f32 0.0, %v383
      %v385 = vpop.f32.mrb[0].mxu0
      %v386 = vadd.f32 0.0, %v385
      %v387 = vpop.f32.mrb[0].mxu0
      %v388 = vadd.f32 0.0, %v387
      %389 = vdwg.mxu0
      %390 = vmatprep.subr.bf16.mxu0 %v332
      %391 = vmatpush1.bf16.msra.mxu0 %v331
      %392 = vmatprep.subr.bf16.mxu0 0
      %393 = vmatpush1.bf16.msra.mxu0 0
      %394 = vmatprep.subr.bf16.mxu0 0
      %395 = vmatpush1.bf16.msra.mxu0 0
      %396 = vmatprep.subr.bf16.mxu0 0
      %397 = vmatpush1.bf16.msra.mxu0 0
      %398 = vmatprep.subr.bf16.mxu0 0
      %399 = vmatpush1.bf16.msra.mxu0 0
      %400 = vmatprep.subr.bf16.mxu0 0
      %401 = vmatpush1.bf16.msra.mxu0 0
      %402 = vmatprep.subr.bf16.mxu0 0
      %403 = vmatpush1.bf16.msra.mxu0 0
      %404 = vmatprep.subr.bf16.mxu0 0
      %405 = vmatpush1.bf16.msra.mxu0 0
      %406 = vmatprep.subr.bf16.mxu0 0
      %407 = vmatpush1.bf16.msra.mxu0 0
      %408 = vmatprep.subr.bf16.mxu0 0
      %409 = vmatpush1.bf16.msra.mxu0 0
      %410 = vmatprep.subr.bf16.mxu0 0
      %411 = vmatpush1.bf16.msra.mxu0 0
      %412 = vmatprep.subr.bf16.mxu0 0
      %413 = vmatpush1.bf16.msra.mxu0 0
      %414 = vmatprep.subr.bf16.mxu0 0
      %415 = vmatpush1.bf16.msra.mxu0 0
      %416 = vmatprep.subr.bf16.mxu0 0
      %417 = vmatpush1.bf16.msra.mxu0 0
      %418 = vmatprep.subr.bf16.mxu0 0
      %419 = vmatpush1.bf16.msra.mxu0 0
      %420 = vmatprep.subr.bf16.mxu0 0
      %421 = vmatpush1.bf16.msra.mxu0 0
      %422 = vmatprep.mubr.bf16.mxu0 0
      %423 = vmatmul.mubr.bf16.gmra.mrb[0].mxu0 %v345
      %v424 = vpop.f32.mrb[0].mxu0
      %v425 = vadd.f32 0.0, %v424
      %v426 = vpop.f32.mrb[0].mxu0
      %v427 = vadd.f32 0.0, %v426
      %v428 = vpop.f32.mrb[0].mxu0
      %v429 = vadd.f32 0.0, %v428
      %v430 = vpop.f32.mrb[0].mxu0
      %v431 = vadd.f32 0.0, %v430
      %432 = vdwg.mxu0
      %433 = vmatprep.subr.bf16.mxu0 %v334
      %434 = vmatpush1.bf16.msra.mxu0 %v333
      %435 = vmatprep.subr.bf16.mxu0 0
      %436 = vmatpush1.bf16.msra.mxu0 0
      %437 = vmatprep.subr.bf16.mxu0 0
      %438 = vmatpush1.bf16.msra.mxu0 0
      %439 = vmatprep.subr.bf16.mxu0 0
      %440 = vmatpush1.bf16.msra.mxu0 0
      %441 = vmatprep.subr.bf16.mxu0 0
      %442 = vmatpush1.bf16.msra.mxu0 0
      %443 = vmatprep.subr.bf16.mxu0 0
      %444 = vmatpush1.bf16.msra.mxu0 0
      %445 = vmatprep.subr.bf16.mxu0 0
      %446 = vmatpush1.bf16.msra.mxu0 0
      %447 = vmatprep.subr.bf16.mxu0 0
      %448 = vmatpush1.bf16.msra.mxu0 0
      %449 = vmatprep.subr.bf16.mxu0 0
      %450 = vmatpush1.bf16.msra.mxu0 0
      %451 = vmatprep.subr.bf16.mxu0 0
      %452 = vmatpush1.bf16.msra.mxu0 0
      %453 = vmatprep.subr.bf16.mxu0 0
      %454 = vmatpush1.bf16.msra.mxu0 0
      %455 = vmatprep.subr.bf16.mxu0 0
      %456 = vmatpush1.bf16.msra.mxu0 0
      %457 = vmatprep.subr.bf16.mxu0 0
      %458 = vmatpush1.bf16.msra.mxu0 0
      %459 = vmatprep.subr.bf16.mxu0 0
      %460 = vmatpush1.bf16.msra.mxu0 0
      %461 = vmatprep.subr.bf16.mxu0 0
      %462 = vmatpush1.bf16.msra.mxu0 0
      %463 = vmatprep.subr.bf16.mxu0 0
      %464 = vmatpush1.bf16.msra.mxu0 0
      %465 = vmatprep.mubr.bf16.mxu0 0
      %466 = vmatmul.mubr.bf16.gmra.mrb[0].mxu0 %v345
      %v467 = vpop.f32.mrb[0].mxu0
      %v468 = vadd.f32 0.0, %v467
      %v469 = vpop.f32.mrb[0].mxu0
      %v470 = vadd.f32 0.0, %v469
      %v471 = vpop.f32.mrb[0].mxu0
      %v472 = vadd.f32 0.0, %v471
      %v473 = vpop.f32.mrb[0].mxu0
      %v474 = vadd.f32 0.0, %v473
      %475 = vdwg.mxu0
      %476 = vmatprep.subr.bf16.mxu0 0
      %477 = vmatpush1.bf16.msra.mxu0 %v335
      %478 = vmatprep.subr.bf16.mxu0 0
      %479 = vmatpush1.bf16.msra.mxu0 0
      %480 = vmatprep.subr.bf16.mxu0 0
      %481 = vmatpush1.bf16.msra.mxu0 0
      %482 = vmatprep.subr.bf16.mxu0 0
      %483 = vmatpush1.bf16.msra.mxu0 0
      %484 = vmatprep.subr.bf16.mxu0 0
      %485 = vmatpush1.bf16.msra.mxu0 0
      %486 = vmatprep.subr.bf16.mxu0 0
      %487 = vmatpush1.bf16.msra.mxu0 0
      %488 = vmatprep.subr.bf16.mxu0 0
      %489 = vmatpush1.bf16.msra.mxu0 0
      %490 = vmatprep.subr.bf16.mxu0 0
      %491 = vmatpush1.bf16.msra.mxu0 0
      %492 = vmatprep.subr.bf16.mxu0 0
      %493 = vmatpush1.bf16.msra.mxu0 0
      %494 = vmatprep.subr.bf16.mxu0 0
      %495 = vmatpush1.bf16.msra.mxu0 0
      %496 = vmatprep.subr.bf16.mxu0 0
      %497 = vmatpush1.bf16.msra.mxu0 0
      %498 = vmatprep.subr.bf16.mxu0 0
      %499 = vmatpush1.bf16.msra.mxu0 0
      %500 = vmatprep.subr.bf16.mxu0 0
      %501 = vmatpush1.bf16.msra.mxu0 0
      %502 = vmatprep.subr.bf16.mxu0 0
      %503 = vmatpush1.bf16.msra.mxu0 0
      %504 = vmatprep.subr.bf16.mxu0 0
      %505 = vmatpush1.bf16.msra.mxu0 0
      %506 = vmatprep.subr.bf16.mxu0 0
      %507 = vmatpush1.bf16.msra.mxu0 0
      %508 = vmatprep.mubr.bf16.mxu0 0
      %509 = vmatmul.mubr.bf16.gmra.mrb[0].mxu0 %v345
      %v510 = vpop.f32.mrb[0].mxu0
      %v511 = vadd.f32 0.0, %v510
      %v512 = vpop.f32.mrb[0].mxu0
      %v513 = vpop.f32.mrb[0].mxu0
      %v514 = vadd.f32 0.0, %v513
      %v515 = vpop.f32.mrb[0].mxu0
      %516 = vdwg.mxu0
      %v517 = vlaneseq
      %v518 = vshrl.u32 %v517, 7
      %v519 = vsub.s32 1, %v518
      %v520 = vrot.slane %v220, %v519
      %v521 = vlaneseq
      %v522 = vshrl.u32 %v521, 7
      %v523 = vsub.s32 3, %v522
      %v524 = vrot.slane %v220, %v523
      %v525 = vlaneseq
      %v526 = vshrl.u32 %v525, 7
      %v527 = vsub.s32 5, %v526
      %v528 = vrot.slane %v220, %v527
      %v529 = vlaneseq
      %v530 = vshrl.u32 %v529, 7
      %v531 = vsub.s32 7, %v530
      %v532 = vrot.slane %v220, %v531
      %v533 = vlaneseq
      %v534 = vshrl.u32 %v533, 7
      %v535 = vsub.s32 1, %v534
      %v536 = vrot.slane %v221, %v535
      %v537 = vlaneseq
      %v538 = vshrl.u32 %v537, 7
      %v539 = vsub.s32 3, %v538
      %v540 = vrot.slane %v221, %v539
      %v541 = vlaneseq
      %v542 = vshrl.u32 %v541, 7
      %v543 = vsub.s32 5, %v542
      %v544 = vrot.slane %v221, %v543
      %v552 = vlaneseq
      %v553 = vshrl.u32 %v552, 7
      %v554 = vsub.s32 1, %v553
      %v555 = vrot.slane %v520, %v554
      %v556 = vlaneseq
      %v557 = vshrl.u32 %v556, 7
      %v558 = vsub.s32 1, %v557
      %v559 = vrot.slane %v524, %v558
      %v560 = vlaneseq
      %v561 = vshrl.u32 %v560, 7
      %v562 = vsub.s32 1, %v561
      %v563 = vrot.slane %v528, %v562
      %v564 = vlaneseq
      %v565 = vshrl.u32 %v564, 7
      %v566 = vsub.s32 1, %v565
      %v567 = vrot.slane %v532, %v566
      %v568 = vlaneseq
      %v569 = vshrl.u32 %v568, 7
      %v570 = vsub.s32 1, %v569
      %v571 = vrot.slane %v536, %v570
      %v572 = vlaneseq
      %v573 = vshrl.u32 %v572, 7
      %v574 = vsub.s32 1, %v573
      %v575 = vrot.slane %v540, %v574
      %v576 = vlaneseq
      %v577 = vshrl.u32 %v576, 7
      %v578 = vsub.s32 1, %v577
      %v579 = vrot.slane %v544, %v578
      %vm580 = vcmp.eq.f32.partialorder %v198, %v555
      %vm581 = vcmp.eq.f32.partialorder %v199, %v559
      %vm582 = vcmp.eq.f32.partialorder %v200, %v563
      %vm583 = vcmp.eq.f32.partialorder %v201, %v567
      %vm584 = vcmp.eq.f32.partialorder %v202, %v571
      %vm585 = vcmp.eq.f32.partialorder %v203, %v575
      %vm586 = vcmp.eq.f32.partialorder %v204, %v579
      %vm587 = vcmp.eq.f32.partialorder %v205, %v555
      %vm588 = vcmp.eq.f32.partialorder %v206, %v559
      %vm589 = vcmp.eq.f32.partialorder %v207, %v563
      %vm590 = vcmp.eq.f32.partialorder %v208, %v567
      %vm591 = vcmp.eq.f32.partialorder %v209, %v571
      %vm592 = vcmp.eq.f32.partialorder %v210, %v575
      %vm593 = vcmp.eq.f32.partialorder %v211, %v579
      %v594 = vsel %vm580, %v382, 0.0
      %v595 = vsel %vm581, %v384, 0.0
      %v596 = vsel %vm582, %v425, 0.0
      %v597 = vsel %vm583, %v427, 0.0
      %v598 = vsel %vm584, %v468, 0.0
      %v599 = vsel %vm585, %v470, 0.0
      %v600 = vsel %vm586, %v511, 0.0
      %v601 = vsel %vm587, %v386, 0.0
      %v602 = vsel %vm588, %v388, 0.0
      %v603 = vsel %vm589, %v429, 0.0
      %v604 = vsel %vm590, %v431, 0.0
      %v605 = vsel %vm591, %v472, 0.0
      %v606 = vsel %vm592, %v474, 0.0
      %v607 = vsel %vm593, %v514, 0.0
      %v608 = vadd.f32 %v594, %v595
      %v609 = vadd.f32 %v608, %v596
      %v610 = vadd.f32 %v609, %v597
      %v611 = vadd.f32 %v610, %v598
      %v612 = vadd.f32 %v611, %v599
      %vm613 = vcmask 80896
      %v614 = vsel %vm613, %v600, 0.0
      %v615 = vadd.f32 %v612, %v614
      %v616 = vadd.f32 %v615, %v601
      %v617 = vadd.f32 %v616, %v602
      %v618 = vadd.f32 %v617, %v603
      %v619 = vadd.f32 %v618, %v604
      %v620 = vadd.f32 %v619, %v605
      %v621 = vadd.f32 %v620, %v606
      %v622 = vsel %vm613, %v607, 0.0
      %v623 = vadd.f32 %v621, %v622
      %624 = vadd.xlane.f32.xlu0 %v623
      %v625 = vpop.xlane.xlu0 %624
      %v626 = vrot.slane %v625, 4
      %v627 = vadd.f32 %v625, %v626
      %v628 = vrot.slane %v627, 2
      %v629 = vadd.f32 %v627, %v628
      %v630 = vrot.slane %v629, 1
      %v631 = vadd.f32 %v629, %v630
      %s632 = vtos %v631
      %vm633 = vcmp.eq.s32.totalorder %v213, 0
      %v634 = vstv %s632
      %v635 = vsel %vm633, %v634, 0.0
      %v636 = vadd.f32 %v635, 0.0
      %s637 = scalar_lea.vmem %s185, 14
      %v638 = vld [vmem:[%s637] sm:$0xff]
      %v639 = vld [vmem:[%s637 + $0x8] sm:$0x3f]
      %v640 = vround.ne.pseudo %v638
      %v641 = vround.ne.pseudo %v639
      %v642 = vmax.f32 %v640, 0.0
      %v643 = vmax.f32 %v641, 0.0
      %v644 = vmin.f32 %v642, 15.0
      %v645 = vmin.f32 %v643, 15.0
      %v648 = vlaneseq
      %v649 = vshrl.u32 %v648, 7
      %v650 = vsub.s32 0, %v649
      %v651 = vrot.slane %v644, %v650
      %v652 = vlaneseq
      %v653 = vshrl.u32 %v652, 7
      %v654 = vsub.s32 2, %v653
      %v655 = vrot.slane %v644, %v654
      %v656 = vlaneseq
      %v657 = vshrl.u32 %v656, 7
      %v658 = vsub.s32 4, %v657
      %v659 = vrot.slane %v644, %v658
      %v660 = vlaneseq
      %v661 = vshrl.u32 %v660, 7
      %v662 = vsub.s32 6, %v661
      %v663 = vrot.slane %v644, %v662
      %v664 = vlaneseq
      %v665 = vshrl.u32 %v664, 7
      %v666 = vsub.s32 0, %v665
      %v667 = vrot.slane %v645, %v666
      %v668 = vlaneseq
      %v669 = vshrl.u32 %v668, 7
      %v670 = vsub.s32 2, %v669
      %v671 = vrot.slane %v645, %v670
      %v672 = vlaneseq
      %v673 = vshrl.u32 %v672, 7
      %v674 = vsub.s32 4, %v673
      %v675 = vrot.slane %v645, %v674
      %v683 = vlaneseq
      %v684 = vshrl.u32 %v683, 7
      %v685 = vsub.s32 0, %v684
      %v686 = vrot.slane %v651, %v685
      %v687 = vlaneseq
      %v688 = vshrl.u32 %v687, 7
      %v689 = vsub.s32 0, %v688
      %v690 = vrot.slane %v655, %v689
      %v691 = vlaneseq
      %v692 = vshrl.u32 %v691, 7
      %v693 = vsub.s32 0, %v692
      %v694 = vrot.slane %v659, %v693
      %v695 = vlaneseq
      %v696 = vshrl.u32 %v695, 7
      %v697 = vsub.s32 0, %v696
      %v698 = vrot.slane %v663, %v697
      %v699 = vlaneseq
      %v700 = vshrl.u32 %v699, 7
      %v701 = vsub.s32 0, %v700
      %v702 = vrot.slane %v667, %v701
      %v703 = vlaneseq
      %v704 = vshrl.u32 %v703, 7
      %v705 = vsub.s32 0, %v704
      %v706 = vrot.slane %v671, %v705
      %v707 = vlaneseq
      %v708 = vshrl.u32 %v707, 7
      %v709 = vsub.s32 0, %v708
      %v710 = vrot.slane %v675, %v709
      %vm711 = vcmp.eq.f32.partialorder %v198, %v686
      %vm712 = vcmp.eq.f32.partialorder %v199, %v690
      %vm713 = vcmp.eq.f32.partialorder %v200, %v694
      %vm714 = vcmp.eq.f32.partialorder %v201, %v698
      %vm715 = vcmp.eq.f32.partialorder %v202, %v702
      %vm716 = vcmp.eq.f32.partialorder %v203, %v706
      %vm717 = vcmp.eq.f32.partialorder %v204, %v710
      %vm718 = vcmp.eq.f32.partialorder %v205, %v686
      %vm719 = vcmp.eq.f32.partialorder %v206, %v690
      %vm720 = vcmp.eq.f32.partialorder %v207, %v694
      %vm721 = vcmp.eq.f32.partialorder %v208, %v698
      %vm722 = vcmp.eq.f32.partialorder %v209, %v702
      %vm723 = vcmp.eq.f32.partialorder %v210, %v706
      %vm724 = vcmp.eq.f32.partialorder %v211, %v710
      %v725 = vsel %vm711, 1, 0
      %v726 = vsel %vm712, 1, 0
      %v727 = vsel %vm713, 1, 0
      %v728 = vsel %vm714, 1, 0
      %v729 = vsel %vm715, 1, 0
      %v730 = vsel %vm716, 1, 0
      %v731 = vsel %vm717, 1, 0
      %v732 = vsel %vm718, 1, 0
      %v733 = vsel %vm719, 1, 0
      %v734 = vsel %vm720, 1, 0
      %v735 = vsel %vm721, 1, 0
      %v736 = vsel %vm722, 1, 0
      %v737 = vsel %vm723, 1, 0
      %v738 = vsel %vm724, 1, 0
      %v739 = vcvt.s32.f32 %v725
      %v740 = vcvt.s32.f32 %v726
      %v741 = vcvt.s32.f32 %v727
      %v742 = vcvt.s32.f32 %v728
      %v743 = vcvt.s32.f32 %v729
      %v744 = vcvt.s32.f32 %v730
      %v745 = vcvt.s32.f32 %v731
      %v746 = vcvt.s32.f32 %v732
      %v747 = vcvt.s32.f32 %v733
      %v748 = vcvt.s32.f32 %v734
      %v749 = vcvt.s32.f32 %v735
      %v750 = vcvt.s32.f32 %v736
      %v751 = vcvt.s32.f32 %v737
      %v752 = vcvt.s32.f32 %v738
      %v753 = vpack.c.bf16 %v746, %v739
      %v754 = vpack.c.bf16 %v747, %v740
      %v755 = vpack.c.bf16 %v748, %v741
      %v756 = vpack.c.bf16 %v749, %v742
      %v757 = vpack.c.bf16 %v750, %v743
      %v758 = vpack.c.bf16 %v751, %v744
      %v759 = vpack.c.bf16 %v752, %v745
      %s760 = scalar_lea.vmem %s192, 8
      %v761 = vld [vmem:[%s760] sm:$0xf]
      %v762 = vld [vmem:[%s760 + $0x4] sm:$0xf]
      %v765 = vunpack.c.l.b16 %v761
      %v766 = vunpack.c.l.b16 %v762
      %v767 = vpack.c.b16 %v766, %v765
      %v769 = vsel %vm343, %v767, 0
      %771 = vmatprep.subr.bf16.mxu0 %v754
      %772 = vmatpush1.bf16.msra.mxu0 %v753
      %773 = vmatprep.subr.bf16.mxu0 0
      %774 = vmatpush1.bf16.msra.mxu0 0
      %775 = vmatprep.subr.bf16.mxu0 0
      %776 = vmatpush1.bf16.msra.mxu0 0
      %777 = vmatprep.subr.bf16.mxu0 0
      %778 = vmatpush1.bf16.msra.mxu0 0
      %779 = vmatprep.subr.bf16.mxu0 0
      %780 = vmatpush1.bf16.msra.mxu0 0
      %781 = vmatprep.subr.bf16.mxu0 0
      %782 = vmatpush1.bf16.msra.mxu0 0
      %783 = vmatprep.subr.bf16.mxu0 0
      %784 = vmatpush1.bf16.msra.mxu0 0
      %785 = vmatprep.subr.bf16.mxu0 0
      %786 = vmatpush1.bf16.msra.mxu0 0
      %787 = vmatprep.subr.bf16.mxu0 0
      %788 = vmatpush1.bf16.msra.mxu0 0
      %789 = vmatprep.subr.bf16.mxu0 0
      %790 = vmatpush1.bf16.msra.mxu0 0
      %791 = vmatprep.subr.bf16.mxu0 0
      %792 = vmatpush1.bf16.msra.mxu0 0
      %793 = vmatprep.subr.bf16.mxu0 0
      %794 = vmatpush1.bf16.msra.mxu0 0
      %795 = vmatprep.subr.bf16.mxu0 0
      %796 = vmatpush1.bf16.msra.mxu0 0
      %797 = vmatprep.subr.bf16.mxu0 0
      %798 = vmatpush1.bf16.msra.mxu0 0
      %799 = vmatprep.subr.bf16.mxu0 0
      %800 = vmatpush1.bf16.msra.mxu0 0
      %801 = vmatprep.subr.bf16.mxu0 0
      %802 = vmatpush1.bf16.msra.mxu0 0
      %803 = vmatprep.mubr.bf16.mxu0 0
      %804 = vmatmul.mubr.bf16.gmra.mrb[0].mxu0 %v769
      %v805 = vpop.f32.mrb[0].mxu0
      %v806 = vadd.f32 0.0, %v805
      %v807 = vpop.f32.mrb[0].mxu0
      %v808 = vadd.f32 0.0, %v807
      %v809 = vpop.f32.mrb[0].mxu0
      %v810 = vadd.f32 0.0, %v809
      %v811 = vpop.f32.mrb[0].mxu0
      %v812 = vadd.f32 0.0, %v811
      %813 = vdwg.mxu0
      %814 = vmatprep.subr.bf16.mxu0 %v756
      %815 = vmatpush1.bf16.msra.mxu0 %v755
      %816 = vmatprep.subr.bf16.mxu0 0
      %817 = vmatpush1.bf16.msra.mxu0 0
      %818 = vmatprep.subr.bf16.mxu0 0
      %819 = vmatpush1.bf16.msra.mxu0 0
      %820 = vmatprep.subr.bf16.mxu0 0
      %821 = vmatpush1.bf16.msra.mxu0 0
      %822 = vmatprep.subr.bf16.mxu0 0
      %823 = vmatpush1.bf16.msra.mxu0 0
      %824 = vmatprep.subr.bf16.mxu0 0
      %825 = vmatpush1.bf16.msra.mxu0 0
      %826 = vmatprep.subr.bf16.mxu0 0
      %827 = vmatpush1.bf16.msra.mxu0 0
      %828 = vmatprep.subr.bf16.mxu0 0
      %829 = vmatpush1.bf16.msra.mxu0 0
      %830 = vmatprep.subr.bf16.mxu0 0
      %831 = vmatpush1.bf16.msra.mxu0 0
      %832 = vmatprep.subr.bf16.mxu0 0
      %833 = vmatpush1.bf16.msra.mxu0 0
      %834 = vmatprep.subr.bf16.mxu0 0
      %835 = vmatpush1.bf16.msra.mxu0 0
      %836 = vmatprep.subr.bf16.mxu0 0
      %837 = vmatpush1.bf16.msra.mxu0 0
      %838 = vmatprep.subr.bf16.mxu0 0
      %839 = vmatpush1.bf16.msra.mxu0 0
      %840 = vmatprep.subr.bf16.mxu0 0
      %841 = vmatpush1.bf16.msra.mxu0 0
      %842 = vmatprep.subr.bf16.mxu0 0
      %843 = vmatpush1.bf16.msra.mxu0 0
      %844 = vmatprep.subr.bf16.mxu0 0
      %845 = vmatpush1.bf16.msra.mxu0 0
      %846 = vmatprep.mubr.bf16.mxu0 0
      %847 = vmatmul.mubr.bf16.gmra.mrb[0].mxu0 %v769
      %v848 = vpop.f32.mrb[0].mxu0
      %v849 = vadd.f32 0.0, %v848
      %v850 = vpop.f32.mrb[0].mxu0
      %v851 = vadd.f32 0.0, %v850
      %v852 = vpop.f32.mrb[0].mxu0
      %v853 = vadd.f32 0.0, %v852
      %v854 = vpop.f32.mrb[0].mxu0
      %v855 = vadd.f32 0.0, %v854
      %856 = vdwg.mxu0
      %857 = vmatprep.subr.bf16.mxu0 %v758
      %858 = vmatpush1.bf16.msra.mxu0 %v757
      %859 = vmatprep.subr.bf16.mxu0 0
      %860 = vmatpush1.bf16.msra.mxu0 0
      %861 = vmatprep.subr.bf16.mxu0 0
      %862 = vmatpush1.bf16.msra.mxu0 0
      %863 = vmatprep.subr.bf16.mxu0 0
      %864 = vmatpush1.bf16.msra.mxu0 0
      %865 = vmatprep.subr.bf16.mxu0 0
      %866 = vmatpush1.bf16.msra.mxu0 0
      %867 = vmatprep.subr.bf16.mxu0 0
      %868 = vmatpush1.bf16.msra.mxu0 0
      %869 = vmatprep.subr.bf16.mxu0 0
      %870 = vmatpush1.bf16.msra.mxu0 0
      %871 = vmatprep.subr.bf16.mxu0 0
      %872 = vmatpush1.bf16.msra.mxu0 0
      %873 = vmatprep.subr.bf16.mxu0 0
      %874 = vmatpush1.bf16.msra.mxu0 0
      %875 = vmatprep.subr.bf16.mxu0 0
      %876 = vmatpush1.bf16.msra.mxu0 0
      %877 = vmatprep.subr.bf16.mxu0 0
      %878 = vmatpush1.bf16.msra.mxu0 0
      %879 = vmatprep.subr.bf16.mxu0 0
      %880 = vmatpush1.bf16.msra.mxu0 0
      %881 = vmatprep.subr.bf16.mxu0 0
      %882 = vmatpush1.bf16.msra.mxu0 0
      %883 = vmatprep.subr.bf16.mxu0 0
      %884 = vmatpush1.bf16.msra.mxu0 0
      %885 = vmatprep.subr.bf16.mxu0 0
      %886 = vmatpush1.bf16.msra.mxu0 0
      %887 = vmatprep.subr.bf16.mxu0 0
      %888 = vmatpush1.bf16.msra.mxu0 0
      %889 = vmatprep.mubr.bf16.mxu0 0
      %890 = vmatmul.mubr.bf16.gmra.mrb[0].mxu0 %v769
      %v891 = vpop.f32.mrb[0].mxu0
      %v892 = vadd.f32 0.0, %v891
      %v893 = vpop.f32.mrb[0].mxu0
      %v894 = vadd.f32 0.0, %v893
      %v895 = vpop.f32.mrb[0].mxu0
      %v896 = vadd.f32 0.0, %v895
      %v897 = vpop.f32.mrb[0].mxu0
      %v898 = vadd.f32 0.0, %v897
      %899 = vdwg.mxu0
      %900 = vmatprep.subr.bf16.mxu0 0
      %901 = vmatpush1.bf16.msra.mxu0 %v759
      %902 = vmatprep.subr.bf16.mxu0 0
      %903 = vmatpush1.bf16.msra.mxu0 0
      %904 = vmatprep.subr.bf16.mxu0 0
      %905 = vmatpush1.bf16.msra.mxu0 0
      %906 = vmatprep.subr.bf16.mxu0 0
      %907 = vmatpush1.bf16.msra.mxu0 0
      %908 = vmatprep.subr.bf16.mxu0 0
      %909 = vmatpush1.bf16.msra.mxu0 0
      %910 = vmatprep.subr.bf16.mxu0 0
      %911 = vmatpush1.bf16.msra.mxu0 0
      %912 = vmatprep.subr.bf16.mxu0 0
      %913 = vmatpush1.bf16.msra.mxu0 0
      %914 = vmatprep.subr.bf16.mxu0 0
      %915 = vmatpush1.bf16.msra.mxu0 0
      %916 = vmatprep.subr.bf16.mxu0 0
      %917 = vmatpush1.bf16.msra.mxu0 0
      %918 = vmatprep.subr.bf16.mxu0 0
      %919 = vmatpush1.bf16.msra.mxu0 0
      %920 = vmatprep.subr.bf16.mxu0 0
      %921 = vmatpush1.bf16.msra.mxu0 0
      %922 = vmatprep.subr.bf16.mxu0 0
      %923 = vmatpush1.bf16.msra.mxu0 0
      %924 = vmatprep.subr.bf16.mxu0 0
      %925 = vmatpush1.bf16.msra.mxu0 0
      %926 = vmatprep.subr.bf16.mxu0 0
      %927 = vmatpush1.bf16.msra.mxu0 0
      %928 = vmatprep.subr.bf16.mxu0 0
      %929 = vmatpush1.bf16.msra.mxu0 0
      %930 = vmatprep.subr.bf16.mxu0 0
      %931 = vmatpush1.bf16.msra.mxu0 0
      %932 = vmatprep.mubr.bf16.mxu0 0
      %933 = vmatmul.mubr.bf16.gmra.mrb[0].mxu0 %v769
      %v934 = vpop.f32.mrb[0].mxu0
      %v935 = vadd.f32 0.0, %v934
      %v936 = vpop.f32.mrb[0].mxu0
      %v937 = vpop.f32.mrb[0].mxu0
      %v938 = vadd.f32 0.0, %v937
      %v939 = vpop.f32.mrb[0].mxu0
      %940 = vdwg.mxu0
      %v941 = vlaneseq
      %v942 = vshrl.u32 %v941, 7
      %v943 = vsub.s32 1, %v942
      %v944 = vrot.slane %v644, %v943
      %v945 = vlaneseq
      %v946 = vshrl.u32 %v945, 7
      %v947 = vsub.s32 3, %v946
      %v948 = vrot.slane %v644, %v947
      %v949 = vlaneseq
      %v950 = vshrl.u32 %v949, 7
      %v951 = vsub.s32 5, %v950
      %v952 = vrot.slane %v644, %v951
      %v953 = vlaneseq
      %v954 = vshrl.u32 %v953, 7
      %v955 = vsub.s32 7, %v954
      %v956 = vrot.slane %v644, %v955
      %v957 = vlaneseq
      %v958 = vshrl.u32 %v957, 7
      %v959 = vsub.s32 1, %v958
      %v960 = vrot.slane %v645, %v959
      %v961 = vlaneseq
      %v962 = vshrl.u32 %v961, 7
      %v963 = vsub.s32 3, %v962
      %v964 = vrot.slane %v645, %v963
      %v965 = vlaneseq
      %v966 = vshrl.u32 %v965, 7
      %v967 = vsub.s32 5, %v966
      %v968 = vrot.slane %v645, %v967
      %v976 = vlaneseq
      %v977 = vshrl.u32 %v976, 7
      %v978 = vsub.s32 1, %v977
      %v979 = vrot.slane %v944, %v978
      %v980 = vlaneseq
      %v981 = vshrl.u32 %v980, 7
      %v982 = vsub.s32 1, %v981
      %v983 = vrot.slane %v948, %v982
      %v984 = vlaneseq
      %v985 = vshrl.u32 %v984, 7
      %v986 = vsub.s32 1, %v985
      %v987 = vrot.slane %v952, %v986
      %v988 = vlaneseq
      %v989 = vshrl.u32 %v988, 7
      %v990 = vsub.s32 1, %v989
      %v991 = vrot.slane %v956, %v990
      %v992 = vlaneseq
      %v993 = vshrl.u32 %v992, 7
      %v994 = vsub.s32 1, %v993
      %v995 = vrot.slane %v960, %v994
      %v996 = vlaneseq
      %v997 = vshrl.u32 %v996, 7
      %v998 = vsub.s32 1, %v997
      %v999 = vrot.slane %v964, %v998
      %v1000 = vlaneseq
      %v1001 = vshrl.u32 %v1000, 7
      %v1002 = vsub.s32 1, %v1001
      %v1003 = vrot.slane %v968, %v1002
      %vm1004 = vcmp.eq.f32.partialorder %v198, %v979
      %vm1005 = vcmp.eq.f32.partialorder %v199, %v983
      %vm1006 = vcmp.eq.f32.partialorder %v200, %v987
      %vm1007 = vcmp.eq.f32.partialorder %v201, %v991
      %vm1008 = vcmp.eq.f32.partialorder %v202, %v995
      %vm1009 = vcmp.eq.f32.partialorder %v203, %v999
      %vm1010 = vcmp.eq.f32.partialorder %v204, %v1003
      %vm1011 = vcmp.eq.f32.partialorder %v205, %v979
      %vm1012 = vcmp.eq.f32.partialorder %v206, %v983
      %vm1013 = vcmp.eq.f32.partialorder %v207, %v987
      %vm1014 = vcmp.eq.f32.partialorder %v208, %v991
      %vm1015 = vcmp.eq.f32.partialorder %v209, %v995
      %vm1016 = vcmp.eq.f32.partialorder %v210, %v999
      %vm1017 = vcmp.eq.f32.partialorder %v211, %v1003
      %v1018 = vsel %vm1004, %v806, 0.0
      %v1019 = vsel %vm1005, %v808, 0.0
      %v1020 = vsel %vm1006, %v849, 0.0
      %v1021 = vsel %vm1007, %v851, 0.0
      %v1022 = vsel %vm1008, %v892, 0.0
      %v1023 = vsel %vm1009, %v894, 0.0
      %v1024 = vsel %vm1010, %v935, 0.0
      %v1025 = vsel %vm1011, %v810, 0.0
      %v1026 = vsel %vm1012, %v812, 0.0
      %v1027 = vsel %vm1013, %v853, 0.0
      %v1028 = vsel %vm1014, %v855, 0.0
      %v1029 = vsel %vm1015, %v896, 0.0
      %v1030 = vsel %vm1016, %v898, 0.0
      %v1031 = vsel %vm1017, %v938, 0.0
      %v1032 = vadd.f32 %v1018, %v1019
      %v1033 = vadd.f32 %v1032, %v1020
      %v1034 = vadd.f32 %v1033, %v1021
      %v1035 = vadd.f32 %v1034, %v1022
      %v1036 = vadd.f32 %v1035, %v1023
      %v1037 = vsel %vm613, %v1024, 0.0
      %v1038 = vadd.f32 %v1036, %v1037
      %v1039 = vadd.f32 %v1038, %v1025
      %v1040 = vadd.f32 %v1039, %v1026
      %v1041 = vadd.f32 %v1040, %v1027
      %v1042 = vadd.f32 %v1041, %v1028
      %v1043 = vadd.f32 %v1042, %v1029
      %v1044 = vadd.f32 %v1043, %v1030
      %v1045 = vsel %vm613, %v1031, 0.0
      %v1046 = vadd.f32 %v1044, %v1045
      %1047 = vadd.xlane.f32.xlu0 %v1046
      %v1048 = vpop.xlane.xlu0 %1047
      %v1049 = vrot.slane %v1048, 4
      %v1050 = vadd.f32 %v1048, %v1049
      %v1051 = vrot.slane %v1050, 2
      %v1052 = vadd.f32 %v1050, %v1051
      %v1053 = vrot.slane %v1052, 1
      %v1054 = vadd.f32 %v1052, %v1053
      %s1055 = vtos %v1054
      %vm1056 = vcmp.eq.s32.totalorder %v213, 1
      %v1057 = vstv %s1055
      %v1058 = vsel %vm1056, %v1057, 0.0
      %v1059 = vadd.f32 %v636, %v1058
      %s1060 = scalar_lea.vmem %s185, 28
      %v1061 = vld [vmem:[%s1060] sm:$0xff]
      %v1062 = vld [vmem:[%s1060 + $0x8] sm:$0x3f]
      %v1063 = vround.ne.pseudo %v1061
      %v1064 = vround.ne.pseudo %v1062
      %v1065 = vmax.f32 %v1063, 0.0
      %v1066 = vmax.f32 %v1064, 0.0
      %v1067 = vmin.f32 %v1065, 15.0
      %v1068 = vmin.f32 %v1066, 15.0
      %v1071 = vlaneseq
      %v1072 = vshrl.u32 %v1071, 7
      %v1073 = vsub.s32 0, %v1072
      %v1074 = vrot.slane %v1067, %v1073
      %v1075 = vlaneseq
      %v1076 = vshrl.u32 %v1075, 7
      %v1077 = vsub.s32 2, %v1076
      %v1078 = vrot.slane %v1067, %v1077
      %v1079 = vlaneseq
      %v1080 = vshrl.u32 %v1079, 7
      %v1081 = vsub.s32 4, %v1080
      %v1082 = vrot.slane %v1067, %v1081
      %v1083 = vlaneseq
      %v1084 = vshrl.u32 %v1083, 7
      %v1085 = vsub.s32 6, %v1084
      %v1086 = vrot.slane %v1067, %v1085
      %v1087 = vlaneseq
      %v1088 = vshrl.u32 %v1087, 7
      %v1089 = vsub.s32 0, %v1088
      %v1090 = vrot.slane %v1068, %v1089
      %v1091 = vlaneseq
      %v1092 = vshrl.u32 %v1091, 7
      %v1093 = vsub.s32 2, %v1092
      %v1094 = vrot.slane %v1068, %v1093
      %v1095 = vlaneseq
      %v1096 = vshrl.u32 %v1095, 7
      %v1097 = vsub.s32 4, %v1096
      %v1098 = vrot.slane %v1068, %v1097
      %v1106 = vlaneseq
      %v1107 = vshrl.u32 %v1106, 7
      %v1108 = vsub.s32 0, %v1107
      %v1109 = vrot.slane %v1074, %v1108
      %v1110 = vlaneseq
      %v1111 = vshrl.u32 %v1110, 7
      %v1112 = vsub.s32 0, %v1111
      %v1113 = vrot.slane %v1078, %v1112
      %v1114 = vlaneseq
      %v1115 = vshrl.u32 %v1114, 7
      %v1116 = vsub.s32 0, %v1115
      %v1117 = vrot.slane %v1082, %v1116
      %v1118 = vlaneseq
      %v1119 = vshrl.u32 %v1118, 7
      %v1120 = vsub.s32 0, %v1119
      %v1121 = vrot.slane %v1086, %v1120
      %v1122 = vlaneseq
      %v1123 = vshrl.u32 %v1122, 7
      %v1124 = vsub.s32 0, %v1123
      %v1125 = vrot.slane %v1090, %v1124
      %v1126 = vlaneseq
      %v1127 = vshrl.u32 %v1126, 7
      %v1128 = vsub.s32 0, %v1127
      %v1129 = vrot.slane %v1094, %v1128
      %v1130 = vlaneseq
      %v1131 = vshrl.u32 %v1130, 7
      %v1132 = vsub.s32 0, %v1131
      %v1133 = vrot.slane %v1098, %v1132
      %vm1134 = vcmp.eq.f32.partialorder %v198, %v1109
      %vm1135 = vcmp.eq.f32.partialorder %v199, %v1113
      %vm1136 = vcmp.eq.f32.partialorder %v200, %v1117
      %vm1137 = vcmp.eq.f32.partialorder %v201, %v1121
      %vm1138 = vcmp.eq.f32.partialorder %v202, %v1125
      %vm1139 = vcmp.eq.f32.partialorder %v203, %v1129
      %vm1140 = vcmp.eq.f32.partialorder %v204, %v1133
      %vm1141 = vcmp.eq.f32.partialorder %v205, %v1109
      %vm1142 = vcmp.eq.f32.partialorder %v206, %v1113
      %vm1143 = vcmp.eq.f32.partialorder %v207, %v1117
      %vm1144 = vcmp.eq.f32.partialorder %v208, %v1121
      %vm1145 = vcmp.eq.f32.partialorder %v209, %v1125
      %vm1146 = vcmp.eq.f32.partialorder %v210, %v1129
      %vm1147 = vcmp.eq.f32.partialorder %v211, %v1133
      %v1148 = vsel %vm1134, 1, 0
      %v1149 = vsel %vm1135, 1, 0
      %v1150 = vsel %vm1136, 1, 0
      %v1151 = vsel %vm1137, 1, 0
      %v1152 = vsel %vm1138, 1, 0
      %v1153 = vsel %vm1139, 1, 0
      %v1154 = vsel %vm1140, 1, 0
      %v1155 = vsel %vm1141, 1, 0
      %v1156 = vsel %vm1142, 1, 0
      %v1157 = vsel %vm1143, 1, 0
      %v1158 = vsel %vm1144, 1, 0
      %v1159 = vsel %vm1145, 1, 0
      %v1160 = vsel %vm1146, 1, 0
      %v1161 = vsel %vm1147, 1, 0
      %v1162 = vcvt.s32.f32 %v1148
      %v1163 = vcvt.s32.f32 %v1149
      %v1164 = vcvt.s32.f32 %v1150
      %v1165 = vcvt.s32.f32 %v1151
      %v1166 = vcvt.s32.f32 %v1152
      %v1167 = vcvt.s32.f32 %v1153
      %v1168 = vcvt.s32.f32 %v1154
      %v1169 = vcvt.s32.f32 %v1155
      %v1170 = vcvt.s32.f32 %v1156
      %v1171 = vcvt.s32.f32 %v1157
      %v1172 = vcvt.s32.f32 %v1158
      %v1173 = vcvt.s32.f32 %v1159
      %v1174 = vcvt.s32.f32 %v1160
      %v1175 = vcvt.s32.f32 %v1161
      %v1176 = vpack.c.bf16 %v1169, %v1162
      %v1177 = vpack.c.bf16 %v1170, %v1163
      %v1178 = vpack.c.bf16 %v1171, %v1164
      %v1179 = vpack.c.bf16 %v1172, %v1165
      %v1180 = vpack.c.bf16 %v1173, %v1166
      %v1181 = vpack.c.bf16 %v1174, %v1167
      %v1182 = vpack.c.bf16 %v1175, %v1168
      %s1183 = scalar_lea.vmem %s192, 16
      %v1184 = vld [vmem:[%s1183] sm:$0xf]
      %v1185 = vld [vmem:[%s1183 + $0x4] sm:$0xf]
      %v1188 = vunpack.c.l.b16 %v1184
      %v1189 = vunpack.c.l.b16 %v1185
      %v1190 = vpack.c.b16 %v1189, %v1188
      %v1192 = vsel %vm343, %v1190, 0
      %1194 = vmatprep.subr.bf16.mxu0 %v1177
      %1195 = vmatpush1.bf16.msra.mxu0 %v1176
      %1196 = vmatprep.subr.bf16.mxu0 0
      %1197 = vmatpush1.bf16.msra.mxu0 0
      %1198 = vmatprep.subr.bf16.mxu0 0
      %1199 = vmatpush1.bf16.msra.mxu0 0
      %1200 = vmatprep.subr.bf16.mxu0 0
      %1201 = vmatpush1.bf16.msra.mxu0 0
      %1202 = vmatprep.subr.bf16.mxu0 0
      %1203 = vmatpush1.bf16.msra.mxu0 0
      %1204 = vmatprep.subr.bf16.mxu0 0
      %1205 = vmatpush1.bf16.msra.mxu0 0
      %1206 = vmatprep.subr.bf16.mxu0 0
      %1207 = vmatpush1.bf16.msra.mxu0 0
      %1208 = vmatprep.subr.bf16.mxu0 0
      %1209 = vmatpush1.bf16.msra.mxu0 0
      %1210 = vmatprep.subr.bf16.mxu0 0
      %1211 = vmatpush1.bf16.msra.mxu0 0
      %1212 = vmatprep.subr.bf16.mxu0 0
      %1213 = vmatpush1.bf16.msra.mxu0 0
      %1214 = vmatprep.subr.bf16.mxu0 0
      %1215 = vmatpush1.bf16.msra.mxu0 0
      %1216 = vmatprep.subr.bf16.mxu0 0
      %1217 = vmatpush1.bf16.msra.mxu0 0
      %1218 = vmatprep.subr.bf16.mxu0 0
      %1219 = vmatpush1.bf16.msra.mxu0 0
      %1220 = vmatprep.subr.bf16.mxu0 0
      %1221 = vmatpush1.bf16.msra.mxu0 0
      %1222 = vmatprep.subr.bf16.mxu0 0
      %1223 = vmatpush1.bf16.msra.mxu0 0
      %1224 = vmatprep.subr.bf16.mxu0 0
      %1225 = vmatpush1.bf16.msra.mxu0 0
      %1226 = vmatprep.mubr.bf16.mxu0 0
      %1227 = vmatmul.mubr.bf16.gmra.mrb[0].mxu0 %v1192
      %v1228 = vpop.f32.mrb[0].mxu0
      %v1229 = vadd.f32 0.0, %v1228
      %v1230 = vpop.f32.mrb[0].mxu0
      %v1231 = vadd.f32 0.0, %v1230
      %v1232 = vpop.f32.mrb[0].mxu0
      %v1233 = vadd.f32 0.0, %v1232
      %v1234 = vpop.f32.mrb[0].mxu0
      %v1235 = vadd.f32 0.0, %v1234
      %1236 = vdwg.mxu0
      %1237 = vmatprep.subr.bf16.mxu0 %v1179
      %1238 = vmatpush1.bf16.msra.mxu0 %v1178
      %1239 = vmatprep.subr.bf16.mxu0 0
      %1240 = vmatpush1.bf16.msra.mxu0 0
      %1241 = vmatprep.subr.bf16.mxu0 0
      %1242 = vmatpush1.bf16.msra.mxu0 0
      %1243 = vmatprep.subr.bf16.mxu0 0
      %1244 = vmatpush1.bf16.msra.mxu0 0
      %1245 = vmatprep.subr.bf16.mxu0 0
      %1246 = vmatpush1.bf16.msra.mxu0 0
      %1247 = vmatprep.subr.bf16.mxu0 0
      %1248 = vmatpush1.bf16.msra.mxu0 0
      %1249 = vmatprep.subr.bf16.mxu0 0
      %1250 = vmatpush1.bf16.msra.mxu0 0
      %1251 = vmatprep.subr.bf16.mxu0 0
      %1252 = vmatpush1.bf16.msra.mxu0 0
      %1253 = vmatprep.subr.bf16.mxu0 0
      %1254 = vmatpush1.bf16.msra.mxu0 0
      %1255 = vmatprep.subr.bf16.mxu0 0
      %1256 = vmatpush1.bf16.msra.mxu0 0
      %1257 = vmatprep.subr.bf16.mxu0 0
      %1258 = vmatpush1.bf16.msra.mxu0 0
      %1259 = vmatprep.subr.bf16.mxu0 0
      %1260 = vmatpush1.bf16.msra.mxu0 0
      %1261 = vmatprep.subr.bf16.mxu0 0
      %1262 = vmatpush1.bf16.msra.mxu0 0
      %1263 = vmatprep.subr.bf16.mxu0 0
      %1264 = vmatpush1.bf16.msra.mxu0 0
      %1265 = vmatprep.subr.bf16.mxu0 0
      %1266 = vmatpush1.bf16.msra.mxu0 0
      %1267 = vmatprep.subr.bf16.mxu0 0
      %1268 = vmatpush1.bf16.msra.mxu0 0
      %1269 = vmatprep.mubr.bf16.mxu0 0
      %1270 = vmatmul.mubr.bf16.gmra.mrb[0].mxu0 %v1192
      %v1271 = vpop.f32.mrb[0].mxu0
      %v1272 = vadd.f32 0.0, %v1271
      %v1273 = vpop.f32.mrb[0].mxu0
      %v1274 = vadd.f32 0.0, %v1273
      %v1275 = vpop.f32.mrb[0].mxu0
      %v1276 = vadd.f32 0.0, %v1275
      %v1277 = vpop.f32.mrb[0].mxu0
      %v1278 = vadd.f32 0.0, %v1277
      %1279 = vdwg.mxu0
      %1280 = vmatprep.subr.bf16.mxu0 %v1181
      %1281 = vmatpush1.bf16.msra.mxu0 %v1180
      %1282 = vmatprep.subr.bf16.mxu0 0
      %1283 = vmatpush1.bf16.msra.mxu0 0
      %1284 = vmatprep.subr.bf16.mxu0 0
      %1285 = vmatpush1.bf16.msra.mxu0 0
      %1286 = vmatprep.subr.bf16.mxu0 0
      %1287 = vmatpush1.bf16.msra.mxu0 0
      %1288 = vmatprep.subr.bf16.mxu0 0
      %1289 = vmatpush1.bf16.msra.mxu0 0
      %1290 = vmatprep.subr.bf16.mxu0 0
      %1291 = vmatpush1.bf16.msra.mxu0 0
      %1292 = vmatprep.subr.bf16.mxu0 0
      %1293 = vmatpush1.bf16.msra.mxu0 0
      %1294 = vmatprep.subr.bf16.mxu0 0
      %1295 = vmatpush1.bf16.msra.mxu0 0
      %1296 = vmatprep.subr.bf16.mxu0 0
      %1297 = vmatpush1.bf16.msra.mxu0 0
      %1298 = vmatprep.subr.bf16.mxu0 0
      %1299 = vmatpush1.bf16.msra.mxu0 0
      %1300 = vmatprep.subr.bf16.mxu0 0
      %1301 = vmatpush1.bf16.msra.mxu0 0
      %1302 = vmatprep.subr.bf16.mxu0 0
      %1303 = vmatpush1.bf16.msra.mxu0 0
      %1304 = vmatprep.subr.bf16.mxu0 0
      %1305 = vmatpush1.bf16.msra.mxu0 0
      %1306 = vmatprep.subr.bf16.mxu0 0
      %1307 = vmatpush1.bf16.msra.mxu0 0
      %1308 = vmatprep.subr.bf16.mxu0 0
      %1309 = vmatpush1.bf16.msra.mxu0 0
      %1310 = vmatprep.subr.bf16.mxu0 0
      %1311 = vmatpush1.bf16.msra.mxu0 0
      %1312 = vmatprep.mubr.bf16.mxu0 0
      %1313 = vmatmul.mubr.bf16.gmra.mrb[0].mxu0 %v1192
      %v1314 = vpop.f32.mrb[0].mxu0
      %v1315 = vadd.f32 0.0, %v1314
      %v1316 = vpop.f32.mrb[0].mxu0
      %v1317 = vadd.f32 0.0, %v1316
      %v1318 = vpop.f32.mrb[0].mxu0
      %v1319 = vadd.f32 0.0, %v1318
      %v1320 = vpop.f32.mrb[0].mxu0
      %v1321 = vadd.f32 0.0, %v1320
      %1322 = vdwg.mxu0
      %1323 = vmatprep.subr.bf16.mxu0 0
      %1324 = vmatpush1.bf16.msra.mxu0 %v1182
      %1325 = vmatprep.subr.bf16.mxu0 0
      %1326 = vmatpush1.bf16.msra.mxu0 0
      %1327 = vmatprep.subr.bf16.mxu0 0
      %1328 = vmatpush1.bf16.msra.mxu0 0
      %1329 = vmatprep.subr.bf16.mxu0 0
      %1330 = vmatpush1.bf16.msra.mxu0 0
      %1331 = vmatprep.subr.bf16.mxu0 0
      %1332 = vmatpush1.bf16.msra.mxu0 0
      %1333 = vmatprep.subr.bf16.mxu0 0
      %1334 = vmatpush1.bf16.msra.mxu0 0
      %1335 = vmatprep.subr.bf16.mxu0 0
      %1336 = vmatpush1.bf16.msra.mxu0 0
      %1337 = vmatprep.subr.bf16.mxu0 0
      %1338 = vmatpush1.bf16.msra.mxu0 0
      %1339 = vmatprep.subr.bf16.mxu0 0
      %1340 = vmatpush1.bf16.msra.mxu0 0
      %1341 = vmatprep.subr.bf16.mxu0 0
      %1342 = vmatpush1.bf16.msra.mxu0 0
      %1343 = vmatprep.subr.bf16.mxu0 0
      %1344 = vmatpush1.bf16.msra.mxu0 0
      %1345 = vmatprep.subr.bf16.mxu0 0
      %1346 = vmatpush1.bf16.msra.mxu0 0
      %1347 = vmatprep.subr.bf16.mxu0 0
      %1348 = vmatpush1.bf16.msra.mxu0 0
      %1349 = vmatprep.subr.bf16.mxu0 0
      %1350 = vmatpush1.bf16.msra.mxu0 0
      %1351 = vmatprep.subr.bf16.mxu0 0
      %1352 = vmatpush1.bf16.msra.mxu0 0
      %1353 = vmatprep.subr.bf16.mxu0 0
      %1354 = vmatpush1.bf16.msra.mxu0 0
      %1355 = vmatprep.mubr.bf16.mxu0 0
      %1356 = vmatmul.mubr.bf16.gmra.mrb[0].mxu0 %v1192
      %v1357 = vpop.f32.mrb[0].mxu0
      %v1358 = vadd.f32 0.0, %v1357
      %v1359 = vpop.f32.mrb[0].mxu0
      %v1360 = vpop.f32.mrb[0].mxu0
      %v1361 = vadd.f32 0.0, %v1360
      %v1362 = vpop.f32.mrb[0].mxu0
      %1363 = vdwg.mxu0
      %v1364 = vlaneseq
      %v1365 = vshrl.u32 %v1364, 7
      %v1366 = vsub.s32 1, %v1365
      %v1367 = vrot.slane %v1067, %v1366
      %v1368 = vlaneseq
      %v1369 = vshrl.u32 %v1368, 7
      %v1370 = vsub.s32 3, %v1369
      %v1371 = vrot.slane %v1067, %v1370
      %v1372 = vlaneseq
      %v1373 = vshrl.u32 %v1372, 7
      %v1374 = vsub.s32 5, %v1373
      %v1375 = vrot.slane %v1067, %v1374
      %v1376 = vlaneseq
      %v1377 = vshrl.u32 %v1376, 7
      %v1378 = vsub.s32 7, %v1377
      %v1379 = vrot.slane %v1067, %v1378
      %v1380 = vlaneseq
      %v1381 = vshrl.u32 %v1380, 7
      %v1382 = vsub.s32 1, %v1381
      %v1383 = vrot.slane %v1068, %v1382
      %v1384 = vlaneseq
      %v1385 = vshrl.u32 %v1384, 7
      %v1386 = vsub.s32 3, %v1385
      %v1387 = vrot.slane %v1068, %v1386
      %v1388 = vlaneseq
      %v1389 = vshrl.u32 %v1388, 7
      %v1390 = vsub.s32 5, %v1389
      %v1391 = vrot.slane %v1068, %v1390
      %v1399 = vlaneseq
      %v1400 = vshrl.u32 %v1399, 7
      %v1401 = vsub.s32 1, %v1400
      %v1402 = vrot.slane %v1367, %v1401
      %v1403 = vlaneseq
      %v1404 = vshrl.u32 %v1403, 7
      %v1405 = vsub.s32 1, %v1404
      %v1406 = vrot.slane %v1371, %v1405
      %v1407 = vlaneseq
      %v1408 = vshrl.u32 %v1407, 7
      %v1409 = vsub.s32 1, %v1408
      %v1410 = vrot.slane %v1375, %v1409
      %v1411 = vlaneseq
      %v1412 = vshrl.u32 %v1411, 7
      %v1413 = vsub.s32 1, %v1412
      %v1414 = vrot.slane %v1379, %v1413
      %v1415 = vlaneseq
      %v1416 = vshrl.u32 %v1415, 7
      %v1417 = vsub.s32 1, %v1416
      %v1418 = vrot.slane %v1383, %v1417
      %v1419 = vlaneseq
      %v1420 = vshrl.u32 %v1419, 7
      %v1421 = vsub.s32 1, %v1420
      %v1422 = vrot.slane %v1387, %v1421
      %v1423 = vlaneseq
      %v1424 = vshrl.u32 %v1423, 7
      %v1425 = vsub.s32 1, %v1424
      %v1426 = vrot.slane %v1391, %v1425
      %vm1427 = vcmp.eq.f32.partialorder %v198, %v1402
      %vm1428 = vcmp.eq.f32.partialorder %v199, %v1406
      %vm1429 = vcmp.eq.f32.partialorder %v200, %v1410
      %vm1430 = vcmp.eq.f32.partialorder %v201, %v1414
      %vm1431 = vcmp.eq.f32.partialorder %v202, %v1418
      %vm1432 = vcmp.eq.f32.partialorder %v203, %v1422
      %vm1433 = vcmp.eq.f32.partialorder %v204, %v1426
      %vm1434 = vcmp.eq.f32.partialorder %v205, %v1402
      %vm1435 = vcmp.eq.f32.partialorder %v206, %v1406
      %vm1436 = vcmp.eq.f32.partialorder %v207, %v1410
      %vm1437 = vcmp.eq.f32.partialorder %v208, %v1414
      %vm1438 = vcmp.eq.f32.partialorder %v209, %v1418
      %vm1439 = vcmp.eq.f32.partialorder %v210, %v1422
      %vm1440 = vcmp.eq.f32.partialorder %v211, %v1426
      %v1441 = vsel %vm1427, %v1229, 0.0
      %v1442 = vsel %vm1428, %v1231, 0.0
      %v1443 = vsel %vm1429, %v1272, 0.0
      %v1444 = vsel %vm1430, %v1274, 0.0
      %v1445 = vsel %vm1431, %v1315, 0.0
      %v1446 = vsel %vm1432, %v1317, 0.0
      %v1447 = vsel %vm1433, %v1358, 0.0
      %v1448 = vsel %vm1434, %v1233, 0.0
      %v1449 = vsel %vm1435, %v1235, 0.0
      %v1450 = vsel %vm1436, %v1276, 0.0
      %v1451 = vsel %vm1437, %v1278, 0.0
      %v1452 = vsel %vm1438, %v1319, 0.0
      %v1453 = vsel %vm1439, %v1321, 0.0
      %v1454 = vsel %vm1440, %v1361, 0.0
      %v1455 = vadd.f32 %v1441, %v1442
      %v1456 = vadd.f32 %v1455, %v1443
      %v1457 = vadd.f32 %v1456, %v1444
      %v1458 = vadd.f32 %v1457, %v1445
      %v1459 = vadd.f32 %v1458, %v1446
      %v1460 = vsel %vm613, %v1447, 0.0
      %v1461 = vadd.f32 %v1459, %v1460
      %v1462 = vadd.f32 %v1461, %v1448
      %v1463 = vadd.f32 %v1462, %v1449
      %v1464 = vadd.f32 %v1463, %v1450
      %v1465 = vadd.f32 %v1464, %v1451
      %v1466 = vadd.f32 %v1465, %v1452
      %v1467 = vadd.f32 %v1466, %v1453
      %v1468 = vsel %vm613, %v1454, 0.0
      %v1469 = vadd.f32 %v1467, %v1468
      %1470 = vadd.xlane.f32.xlu0 %v1469
      %v1471 = vpop.xlane.xlu0 %1470
      %v1472 = vrot.slane %v1471, 4
      %v1473 = vadd.f32 %v1471, %v1472
      %v1474 = vrot.slane %v1473, 2
      %v1475 = vadd.f32 %v1473, %v1474
      %v1476 = vrot.slane %v1475, 1
      %v1477 = vadd.f32 %v1475, %v1476
      %s1478 = vtos %v1477
      %vm1479 = vcmp.eq.s32.totalorder %v213, 2
      %v1480 = vstv %s1478
      %v1481 = vsel %vm1479, %v1480, 0.0
      %v1482 = vadd.f32 %v1059, %v1481
      %s1483 = scalar_lea.vmem %s185, 42
      %v1484 = vld [vmem:[%s1483] sm:$0xff]
      %v1485 = vld [vmem:[%s1483 + $0x8] sm:$0x3f]
      %v1486 = vround.ne.pseudo %v1484
      %v1487 = vround.ne.pseudo %v1485
      %v1488 = vmax.f32 %v1486, 0.0
      %v1489 = vmax.f32 %v1487, 0.0
      %v1490 = vmin.f32 %v1488, 15.0
      %v1491 = vmin.f32 %v1489, 15.0
      %v1494 = vlaneseq
      %v1495 = vshrl.u32 %v1494, 7
      %v1496 = vsub.s32 0, %v1495
      %v1497 = vrot.slane %v1490, %v1496
      %v1498 = vlaneseq
      %v1499 = vshrl.u32 %v1498, 7
      %v1500 = vsub.s32 2, %v1499
      %v1501 = vrot.slane %v1490, %v1500
      %v1502 = vlaneseq
      %v1503 = vshrl.u32 %v1502, 7
      %v1504 = vsub.s32 4, %v1503
      %v1505 = vrot.slane %v1490, %v1504
      %v1506 = vlaneseq
      %v1507 = vshrl.u32 %v1506, 7
      %v1508 = vsub.s32 6, %v1507
      %v1509 = vrot.slane %v1490, %v1508
      %v1510 = vlaneseq
      %v1511 = vshrl.u32 %v1510, 7
      %v1512 = vsub.s32 0, %v1511
      %v1513 = vrot.slane %v1491, %v1512
      %v1514 = vlaneseq
      %v1515 = vshrl.u32 %v1514, 7
      %v1516 = vsub.s32 2, %v1515
      %v1517 = vrot.slane %v1491, %v1516
      %v1518 = vlaneseq
      %v1519 = vshrl.u32 %v1518, 7
      %v1520 = vsub.s32 4, %v1519
      %v1521 = vrot.slane %v1491, %v1520
      %v1529 = vlaneseq
      %v1530 = vshrl.u32 %v1529, 7
      %v1531 = vsub.s32 0, %v1530
      %v1532 = vrot.slane %v1497, %v1531
      %v1533 = vlaneseq
      %v1534 = vshrl.u32 %v1533, 7
      %v1535 = vsub.s32 0, %v1534
      %v1536 = vrot.slane %v1501, %v1535
      %v1537 = vlaneseq
      %v1538 = vshrl.u32 %v1537, 7
      %v1539 = vsub.s32 0, %v1538
      %v1540 = vrot.slane %v1505, %v1539
      %v1541 = vlaneseq
      %v1542 = vshrl.u32 %v1541, 7
      %v1543 = vsub.s32 0, %v1542
      %v1544 = vrot.slane %v1509, %v1543
      %v1545 = vlaneseq
      %v1546 = vshrl.u32 %v1545, 7
      %v1547 = vsub.s32 0, %v1546
      %v1548 = vrot.slane %v1513, %v1547
      %v1549 = vlaneseq
      %v1550 = vshrl.u32 %v1549, 7
      %v1551 = vsub.s32 0, %v1550
      %v1552 = vrot.slane %v1517, %v1551
      %v1553 = vlaneseq
      %v1554 = vshrl.u32 %v1553, 7
      %v1555 = vsub.s32 0, %v1554
      %v1556 = vrot.slane %v1521, %v1555
      %vm1557 = vcmp.eq.f32.partialorder %v198, %v1532
      %vm1558 = vcmp.eq.f32.partialorder %v199, %v1536
      %vm1559 = vcmp.eq.f32.partialorder %v200, %v1540
      %vm1560 = vcmp.eq.f32.partialorder %v201, %v1544
      %vm1561 = vcmp.eq.f32.partialorder %v202, %v1548
      %vm1562 = vcmp.eq.f32.partialorder %v203, %v1552
      %vm1563 = vcmp.eq.f32.partialorder %v204, %v1556
      %vm1564 = vcmp.eq.f32.partialorder %v205, %v1532
      %vm1565 = vcmp.eq.f32.partialorder %v206, %v1536
      %vm1566 = vcmp.eq.f32.partialorder %v207, %v1540
      %vm1567 = vcmp.eq.f32.partialorder %v208, %v1544
      %vm1568 = vcmp.eq.f32.partialorder %v209, %v1548
      %vm1569 = vcmp.eq.f32.partialorder %v210, %v1552
      %vm1570 = vcmp.eq.f32.partialorder %v211, %v1556
      %v1571 = vsel %vm1557, 1, 0
      %v1572 = vsel %vm1558, 1, 0
      %v1573 = vsel %vm1559, 1, 0
      %v1574 = vsel %vm1560, 1, 0
      %v1575 = vsel %vm1561, 1, 0
      %v1576 = vsel %vm1562, 1, 0
      %v1577 = vsel %vm1563, 1, 0
      %v1578 = vsel %vm1564, 1, 0
      %v1579 = vsel %vm1565, 1, 0
      %v1580 = vsel %vm1566, 1, 0
      %v1581 = vsel %vm1567, 1, 0
      %v1582 = vsel %vm1568, 1, 0
      %v1583 = vsel %vm1569, 1, 0
      %v1584 = vsel %vm1570, 1, 0
      %v1585 = vcvt.s32.f32 %v1571
      %v1586 = vcvt.s32.f32 %v1572
      %v1587 = vcvt.s32.f32 %v1573
      %v1588 = vcvt.s32.f32 %v1574
      %v1589 = vcvt.s32.f32 %v1575
      %v1590 = vcvt.s32.f32 %v1576
      %v1591 = vcvt.s32.f32 %v1577
      %v1592 = vcvt.s32.f32 %v1578
      %v1593 = vcvt.s32.f32 %v1579
      %v1594 = vcvt.s32.f32 %v1580
      %v1595 = vcvt.s32.f32 %v1581
      %v1596 = vcvt.s32.f32 %v1582
      %v1597 = vcvt.s32.f32 %v1583
      %v1598 = vcvt.s32.f32 %v1584
      %v1599 = vpack.c.bf16 %v1592, %v1585
      %v1600 = vpack.c.bf16 %v1593, %v1586
      %v1601 = vpack.c.bf16 %v1594, %v1587
      %v1602 = vpack.c.bf16 %v1595, %v1588
      %v1603 = vpack.c.bf16 %v1596, %v1589
      %v1604 = vpack.c.bf16 %v1597, %v1590
      %v1605 = vpack.c.bf16 %v1598, %v1591
      %s1606 = scalar_lea.vmem %s192, 24
      %v1607 = vld [vmem:[%s1606] sm:$0xf]
      %v1608 = vld [vmem:[%s1606 + $0x4] sm:$0xf]
      %v1611 = vunpack.c.l.b16 %v1607
      %v1612 = vunpack.c.l.b16 %v1608
      %v1613 = vpack.c.b16 %v1612, %v1611
      %v1615 = vsel %vm343, %v1613, 0
      %1617 = vmatprep.subr.bf16.mxu0 %v1600
      %1618 = vmatpush1.bf16.msra.mxu0 %v1599
      %1619 = vmatprep.subr.bf16.mxu0 0
      %1620 = vmatpush1.bf16.msra.mxu0 0
      %1621 = vmatprep.subr.bf16.mxu0 0
      %1622 = vmatpush1.bf16.msra.mxu0 0
      %1623 = vmatprep.subr.bf16.mxu0 0
      %1624 = vmatpush1.bf16.msra.mxu0 0
      %1625 = vmatprep.subr.bf16.mxu0 0
      %1626 = vmatpush1.bf16.msra.mxu0 0
      %1627 = vmatprep.subr.bf16.mxu0 0
      %1628 = vmatpush1.bf16.msra.mxu0 0
      %1629 = vmatprep.subr.bf16.mxu0 0
      %1630 = vmatpush1.bf16.msra.mxu0 0
      %1631 = vmatprep.subr.bf16.mxu0 0
      %1632 = vmatpush1.bf16.msra.mxu0 0
      %1633 = vmatprep.subr.bf16.mxu0 0
      %1634 = vmatpush1.bf16.msra.mxu0 0
      %1635 = vmatprep.subr.bf16.mxu0 0
      %1636 = vmatpush1.bf16.msra.mxu0 0
      %1637 = vmatprep.subr.bf16.mxu0 0
      %1638 = vmatpush1.bf16.msra.mxu0 0
      %1639 = vmatprep.subr.bf16.mxu0 0
      %1640 = vmatpush1.bf16.msra.mxu0 0
      %1641 = vmatprep.subr.bf16.mxu0 0
      %1642 = vmatpush1.bf16.msra.mxu0 0
      %1643 = vmatprep.subr.bf16.mxu0 0
      %1644 = vmatpush1.bf16.msra.mxu0 0
      %1645 = vmatprep.subr.bf16.mxu0 0
      %1646 = vmatpush1.bf16.msra.mxu0 0
      %1647 = vmatprep.subr.bf16.mxu0 0
      %1648 = vmatpush1.bf16.msra.mxu0 0
      %1649 = vmatprep.mubr.bf16.mxu0 0
      %1650 = vmatmul.mubr.bf16.gmra.mrb[0].mxu0 %v1615
      %v1651 = vpop.f32.mrb[0].mxu0
      %v1652 = vadd.f32 0.0, %v1651
      %v1653 = vpop.f32.mrb[0].mxu0
      %v1654 = vadd.f32 0.0, %v1653
      %v1655 = vpop.f32.mrb[0].mxu0
      %v1656 = vadd.f32 0.0, %v1655
      %v1657 = vpop.f32.mrb[0].mxu0
      %v1658 = vadd.f32 0.0, %v1657
      %1659 = vdwg.mxu0
      %1660 = vmatprep.subr.bf16.mxu0 %v1602
      %1661 = vmatpush1.bf16.msra.mxu0 %v1601
      %1662 = vmatprep.subr.bf16.mxu0 0
      %1663 = vmatpush1.bf16.msra.mxu0 0
      %1664 = vmatprep.subr.bf16.mxu0 0
      %1665 = vmatpush1.bf16.msra.mxu0 0
      %1666 = vmatprep.subr.bf16.mxu0 0
      %1667 = vmatpush1.bf16.msra.mxu0 0
      %1668 = vmatprep.subr.bf16.mxu0 0
      %1669 = vmatpush1.bf16.msra.mxu0 0
      %1670 = vmatprep.subr.bf16.mxu0 0
      %1671 = vmatpush1.bf16.msra.mxu0 0
      %1672 = vmatprep.subr.bf16.mxu0 0
      %1673 = vmatpush1.bf16.msra.mxu0 0
      %1674 = vmatprep.subr.bf16.mxu0 0
      %1675 = vmatpush1.bf16.msra.mxu0 0
      %1676 = vmatprep.subr.bf16.mxu0 0
      %1677 = vmatpush1.bf16.msra.mxu0 0
      %1678 = vmatprep.subr.bf16.mxu0 0
      %1679 = vmatpush1.bf16.msra.mxu0 0
      %1680 = vmatprep.subr.bf16.mxu0 0
      %1681 = vmatpush1.bf16.msra.mxu0 0
      %1682 = vmatprep.subr.bf16.mxu0 0
      %1683 = vmatpush1.bf16.msra.mxu0 0
      %1684 = vmatprep.subr.bf16.mxu0 0
      %1685 = vmatpush1.bf16.msra.mxu0 0
      %1686 = vmatprep.subr.bf16.mxu0 0
      %1687 = vmatpush1.bf16.msra.mxu0 0
      %1688 = vmatprep.subr.bf16.mxu0 0
      %1689 = vmatpush1.bf16.msra.mxu0 0
      %1690 = vmatprep.subr.bf16.mxu0 0
      %1691 = vmatpush1.bf16.msra.mxu0 0
      %1692 = vmatprep.mubr.bf16.mxu0 0
      %1693 = vmatmul.mubr.bf16.gmra.mrb[0].mxu0 %v1615
      %v1694 = vpop.f32.mrb[0].mxu0
      %v1695 = vadd.f32 0.0, %v1694
      %v1696 = vpop.f32.mrb[0].mxu0
      %v1697 = vadd.f32 0.0, %v1696
      %v1698 = vpop.f32.mrb[0].mxu0
      %v1699 = vadd.f32 0.0, %v1698
      %v1700 = vpop.f32.mrb[0].mxu0
      %v1701 = vadd.f32 0.0, %v1700
      %1702 = vdwg.mxu0
      %1703 = vmatprep.subr.bf16.mxu0 %v1604
      %1704 = vmatpush1.bf16.msra.mxu0 %v1603
      %1705 = vmatprep.subr.bf16.mxu0 0
      %1706 = vmatpush1.bf16.msra.mxu0 0
      %1707 = vmatprep.subr.bf16.mxu0 0
      %1708 = vmatpush1.bf16.msra.mxu0 0
      %1709 = vmatprep.subr.bf16.mxu0 0
      %1710 = vmatpush1.bf16.msra.mxu0 0
      %1711 = vmatprep.subr.bf16.mxu0 0
      %1712 = vmatpush1.bf16.msra.mxu0 0
      %1713 = vmatprep.subr.bf16.mxu0 0
      %1714 = vmatpush1.bf16.msra.mxu0 0
      %1715 = vmatprep.subr.bf16.mxu0 0
      %1716 = vmatpush1.bf16.msra.mxu0 0
      %1717 = vmatprep.subr.bf16.mxu0 0
      %1718 = vmatpush1.bf16.msra.mxu0 0
      %1719 = vmatprep.subr.bf16.mxu0 0
      %1720 = vmatpush1.bf16.msra.mxu0 0
      %1721 = vmatprep.subr.bf16.mxu0 0
      %1722 = vmatpush1.bf16.msra.mxu0 0
      %1723 = vmatprep.subr.bf16.mxu0 0
      %1724 = vmatpush1.bf16.msra.mxu0 0
      %1725 = vmatprep.subr.bf16.mxu0 0
      %1726 = vmatpush1.bf16.msra.mxu0 0
      %1727 = vmatprep.subr.bf16.mxu0 0
      %1728 = vmatpush1.bf16.msra.mxu0 0
      %1729 = vmatprep.subr.bf16.mxu0 0
      %1730 = vmatpush1.bf16.msra.mxu0 0
      %1731 = vmatprep.subr.bf16.mxu0 0
      %1732 = vmatpush1.bf16.msra.mxu0 0
      %1733 = vmatprep.subr.bf16.mxu0 0
      %1734 = vmatpush1.bf16.msra.mxu0 0
      %1735 = vmatprep.mubr.bf16.mxu0 0
      %1736 = vmatmul.mubr.bf16.gmra.mrb[0].mxu0 %v1615
      %v1737 = vpop.f32.mrb[0].mxu0
      %v1738 = vadd.f32 0.0, %v1737
      %v1739 = vpop.f32.mrb[0].mxu0
      %v1740 = vadd.f32 0.0, %v1739
      %v1741 = vpop.f32.mrb[0].mxu0
      %v1742 = vadd.f32 0.0, %v1741
      %v1743 = vpop.f32.mrb[0].mxu0
      %v1744 = vadd.f32 0.0, %v1743
      %1745 = vdwg.mxu0
      %1746 = vmatprep.subr.bf16.mxu0 0
      %1747 = vmatpush1.bf16.msra.mxu0 %v1605
      %1748 = vmatprep.subr.bf16.mxu0 0
      %1749 = vmatpush1.bf16.msra.mxu0 0
      %1750 = vmatprep.subr.bf16.mxu0 0
      %1751 = vmatpush1.bf16.msra.mxu0 0
      %1752 = vmatprep.subr.bf16.mxu0 0
      %1753 = vmatpush1.bf16.msra.mxu0 0
      %1754 = vmatprep.subr.bf16.mxu0 0
      %1755 = vmatpush1.bf16.msra.mxu0 0
      %1756 = vmatprep.subr.bf16.mxu0 0
      %1757 = vmatpush1.bf16.msra.mxu0 0
      %1758 = vmatprep.subr.bf16.mxu0 0
      %1759 = vmatpush1.bf16.msra.mxu0 0
      %1760 = vmatprep.subr.bf16.mxu0 0
      %1761 = vmatpush1.bf16.msra.mxu0 0
      %1762 = vmatprep.subr.bf16.mxu0 0
      %1763 = vmatpush1.bf16.msra.mxu0 0
      %1764 = vmatprep.subr.bf16.mxu0 0
      %1765 = vmatpush1.bf16.msra.mxu0 0
      %1766 = vmatprep.subr.bf16.mxu0 0
      %1767 = vmatpush1.bf16.msra.mxu0 0
      %1768 = vmatprep.subr.bf16.mxu0 0
      %1769 = vmatpush1.bf16.msra.mxu0 0
      %1770 = vmatprep.subr.bf16.mxu0 0
      %1771 = vmatpush1.bf16.msra.mxu0 0
      %1772 = vmatprep.subr.bf16.mxu0 0
      %1773 = vmatpush1.bf16.msra.mxu0 0
      %1774 = vmatprep.subr.bf16.mxu0 0
      %1775 = vmatpush1.bf16.msra.mxu0 0
      %1776 = vmatprep.subr.bf16.mxu0 0
      %1777 = vmatpush1.bf16.msra.mxu0 0
      %1778 = vmatprep.mubr.bf16.mxu0 0
      %1779 = vmatmul.mubr.bf16.gmra.mrb[0].mxu0 %v1615
      %v1780 = vpop.f32.mrb[0].mxu0
      %v1781 = vadd.f32 0.0, %v1780
      %v1782 = vpop.f32.mrb[0].mxu0
      %v1783 = vpop.f32.mrb[0].mxu0
      %v1784 = vadd.f32 0.0, %v1783
      %v1785 = vpop.f32.mrb[0].mxu0
      %1786 = vdwg.mxu0
      %v1787 = vlaneseq
      %v1788 = vshrl.u32 %v1787, 7
      %v1789 = vsub.s32 1, %v1788
      %v1790 = vrot.slane %v1490, %v1789
      %v1791 = vlaneseq
      %v1792 = vshrl.u32 %v1791, 7
      %v1793 = vsub.s32 3, %v1792
      %v1794 = vrot.slane %v1490, %v1793
      %v1795 = vlaneseq
      %v1796 = vshrl.u32 %v1795, 7
      %v1797 = vsub.s32 5, %v1796
      %v1798 = vrot.slane %v1490, %v1797
      %v1799 = vlaneseq
      %v1800 = vshrl.u32 %v1799, 7
      %v1801 = vsub.s32 7, %v1800
      %v1802 = vrot.slane %v1490, %v1801
      %v1803 = vlaneseq
      %v1804 = vshrl.u32 %v1803, 7
      %v1805 = vsub.s32 1, %v1804
      %v1806 = vrot.slane %v1491, %v1805
      %v1807 = vlaneseq
      %v1808 = vshrl.u32 %v1807, 7
      %v1809 = vsub.s32 3, %v1808
      %v1810 = vrot.slane %v1491, %v1809
      %v1811 = vlaneseq
      %v1812 = vshrl.u32 %v1811, 7
      %v1813 = vsub.s32 5, %v1812
      %v1814 = vrot.slane %v1491, %v1813
      %v1822 = vlaneseq
      %v1823 = vshrl.u32 %v1822, 7
      %v1824 = vsub.s32 1, %v1823
      %v1825 = vrot.slane %v1790, %v1824
      %v1826 = vlaneseq
      %v1827 = vshrl.u32 %v1826, 7
      %v1828 = vsub.s32 1, %v1827
      %v1829 = vrot.slane %v1794, %v1828
      %v1830 = vlaneseq
      %v1831 = vshrl.u32 %v1830, 7
      %v1832 = vsub.s32 1, %v1831
      %v1833 = vrot.slane %v1798, %v1832
      %v1834 = vlaneseq
      %v1835 = vshrl.u32 %v1834, 7
      %v1836 = vsub.s32 1, %v1835
      %v1837 = vrot.slane %v1802, %v1836
      %v1838 = vlaneseq
      %v1839 = vshrl.u32 %v1838, 7
      %v1840 = vsub.s32 1, %v1839
      %v1841 = vrot.slane %v1806, %v1840
      %v1842 = vlaneseq
      %v1843 = vshrl.u32 %v1842, 7
      %v1844 = vsub.s32 1, %v1843
      %v1845 = vrot.slane %v1810, %v1844
      %v1846 = vlaneseq
      %v1847 = vshrl.u32 %v1846, 7
      %v1848 = vsub.s32 1, %v1847
      %v1849 = vrot.slane %v1814, %v1848
      %vm1850 = vcmp.eq.f32.partialorder %v198, %v1825
      %vm1851 = vcmp.eq.f32.partialorder %v199, %v1829
      %vm1852 = vcmp.eq.f32.partialorder %v200, %v1833
      %vm1853 = vcmp.eq.f32.partialorder %v201, %v1837
      %vm1854 = vcmp.eq.f32.partialorder %v202, %v1841
      %vm1855 = vcmp.eq.f32.partialorder %v203, %v1845
      %vm1856 = vcmp.eq.f32.partialorder %v204, %v1849
      %vm1857 = vcmp.eq.f32.partialorder %v205, %v1825
      %vm1858 = vcmp.eq.f32.partialorder %v206, %v1829
      %vm1859 = vcmp.eq.f32.partialorder %v207, %v1833
      %vm1860 = vcmp.eq.f32.partialorder %v208, %v1837
      %vm1861 = vcmp.eq.f32.partialorder %v209, %v1841
      %vm1862 = vcmp.eq.f32.partialorder %v210, %v1845
      %vm1863 = vcmp.eq.f32.partialorder %v211, %v1849
      %v1864 = vsel %vm1850, %v1652, 0.0
      %v1865 = vsel %vm1851, %v1654, 0.0
      %v1866 = vsel %vm1852, %v1695, 0.0
      %v1867 = vsel %vm1853, %v1697, 0.0
      %v1868 = vsel %vm1854, %v1738, 0.0
      %v1869 = vsel %vm1855, %v1740, 0.0
      %v1870 = vsel %vm1856, %v1781, 0.0
      %v1871 = vsel %vm1857, %v1656, 0.0
      %v1872 = vsel %vm1858, %v1658, 0.0
      %v1873 = vsel %vm1859, %v1699, 0.0
      %v1874 = vsel %vm1860, %v1701, 0.0
      %v1875 = vsel %vm1861, %v1742, 0.0
      %v1876 = vsel %vm1862, %v1744, 0.0
      %v1877 = vsel %vm1863, %v1784, 0.0
      %v1878 = vadd.f32 %v1864, %v1865
      %v1879 = vadd.f32 %v1878, %v1866
      %v1880 = vadd.f32 %v1879, %v1867
      %v1881 = vadd.f32 %v1880, %v1868
      %v1882 = vadd.f32 %v1881, %v1869
      %v1883 = vsel %vm613, %v1870, 0.0
      %v1884 = vadd.f32 %v1882, %v1883
      %v1885 = vadd.f32 %v1884, %v1871
      %v1886 = vadd.f32 %v1885, %v1872
      %v1887 = vadd.f32 %v1886, %v1873
      %v1888 = vadd.f32 %v1887, %v1874
      %v1889 = vadd.f32 %v1888, %v1875
      %v1890 = vadd.f32 %v1889, %v1876
      %v1891 = vsel %vm613, %v1877, 0.0
      %v1892 = vadd.f32 %v1890, %v1891
      %1893 = vadd.xlane.f32.xlu0 %v1892
      %v1894 = vpop.xlane.xlu0 %1893
      %v1895 = vrot.slane %v1894, 4
      %v1896 = vadd.f32 %v1894, %v1895
      %v1897 = vrot.slane %v1896, 2
      %v1898 = vadd.f32 %v1896, %v1897
      %v1899 = vrot.slane %v1898, 1
      %v1900 = vadd.f32 %v1898, %v1899
      %s1901 = vtos %v1900
      %vm1902 = vcmp.eq.s32.totalorder %v213, 3
      %v1903 = vstv %s1901
      %v1904 = vsel %vm1902, %v1903, 0.0
      %v1905 = vadd.f32 %v1482, %v1904
      %vm1906 = vcmask 24576
      %1907 = vst.msk [vmem:[%s196] sm:$0x1] %vm1906, %v1905
      %p1908 = scmp.lt.s32.totalorder %s14, 1
      %s1909 = scalar_select %p1908, %s14, 1
      %s1910 = scalar_lea.vmem %s3, %s1909
      // Predicated region
      $region33: #{_hand3d_forward.1} parent=31 // pred_check
        %p1911 = pneg %p105
      $region34: #{_hand3d_forward.1} parent=31 // pred_check_branch
        %1913 = sbr.rel (%p1911) target = $region36
      $region35: #{_hand3d_forward.1} parent=31 // pred_region
        _
      $region36: #{_hand3d_forward.1} parent=31 // pred_fallthru
        _
    $region32: #{_hand3d_forward.1} parent=5 // pred_fallthru
      _
    %p1914 = scmp.le.s32.totalorder 2, %s9
    // Predicated region
    $region37: #{_hand3d_forward.1} parent=5 // pred_check
      %p1915 = pneg %p1914
    $region38: #{_hand3d_forward.1} parent=5 // pred_check_branch
      %1917 = sbr.rel (%p1915) target = $region40
    $region39: #{_hand3d_forward.1} parent=5 // pred_region
      %s1918 = ssub.s32 %s9, 2
      // Predicated region
      $region41: #{_hand3d_forward.1} parent=39 // pred_check
        %p1919 = pneg %p111
      $region42: #{_hand3d_forward.1} parent=39 // pred_check_branch
        %1921 = sbr.rel (%p1919) target = $region44
      $region43: #{_hand3d_forward.1} parent=39 // pred_region
        %p1922 = scmp.lt.s32.totalorder %s15, 1
        %s1923 = scalar_select %p1922, %s15, 1
        %s1924 = scalar_lea.vmem %s3, %s1923
      $region44: #{_hand3d_forward.1} parent=39 // pred_fallthru
        _
    $region40: #{_hand3d_forward.1} parent=5 // pred_fallthru
      _
  $region6: #{_hand3d_forward.1} parent=0 // loop_footer
    %s13 = sadd.s32 1, %s9
  $region7: #{_hand3d_forward.1} parent=0 // loop_footer_branch
    %8 = sbr.rel target = $region3
  $region8: #{_hand3d_forward.1} parent=0 // loop_exit
    _

</llo_original>
